<compile_context>
chip_gen: v7x
topology: tpu7x:2x2x1
jax: 0.10.0
libtpu: 0.0.40
codegen_flags: <defaults>
</compile_context>

<pallas_src>
import math
from functools import partial

import jax
import jax.numpy as jnp
from jax.experimental import pallas as pl
from jax.experimental.pallas import tpu as pltpu


def _round_up(x, m):
    return (x + m - 1) // m * m


# ----------------------------------------------------------------------------
# Whole-model kernel: grid = (batch_tiles, layers).  The layer axis is sequential
# ("arbitrary"); the (Bt, S, C) activation lives in a per-core VMEM scratch across
# all layers; the weight-tied lm_head is fused into the last layer step.
# ----------------------------------------------------------------------------
def _model_kernel(x_ref, wf_ref, bf_ref, wo_ref, bo_ref, embT_ref,
                  o_ref, act_ref, *, batch_tile, seq_len, channels, num_heads,
                  num_layers):
    Bt, S, C, H, L = batch_tile, seq_len, channels, num_heads, num_layers
    M = Bt * S
    hd = C // H
    G = H * Bt                                 # attention groups = (head, batch)
    layer = pl.program_id(1)

    # Layer 0 of this batch tile: load the embedded tokens into the VMEM-resident
    # activation (it stays there for all L layers — no per-layer HBM round trips).
    @pl.when(layer == 0)
    def _():
        act_ref[...] = x_ref[...]

    x3 = act_ref[...]                                         # (Bt, S, C) f32

    # --- k=3 "same"-padded conv halo, built in-register -----------------------
    # The boundary mask only varies along S: build it as (1, S, 1) and broadcast.
    s_idx = jax.lax.broadcasted_iota(jnp.int32, (1, S, 1), 1)
    x_prev = jnp.where(s_idx == 0, 0.0, pltpu.roll(x3, shift=1, axis=1))
    x_next = jnp.where(s_idx == S - 1, 0.0, pltpu.roll(x3, shift=S - 1, axis=1))

    # --- fused Conv1d(C->3C, k=3) + MHA in_proj --------------------------------
    # Three accumulated (M, C) @ (C, 3C) matmuls against the tap blocks of the
    # fused weight (no lane-dim concat / no (M, 3C) bf16 temp).
    wf = wf_ref[0]                                            # (3C, 3C) bf16
    qkv = (jnp.dot(x_prev.reshape(M, C).astype(jnp.bfloat16), wf[0:C, :],
                   preferred_element_type=jnp.float32)
           + jnp.dot(x3.reshape(M, C).astype(jnp.bfloat16), wf[C:2 * C, :],
                     preferred_element_type=jnp.float32)
           + jnp.dot(x_next.reshape(M, C).astype(jnp.bfloat16), wf[2 * C:, :],
                     preferred_element_type=jnp.float32)
           + bf_ref[0])                                       # (M, 3C) f32

    # --- split q/k/v and heads into one batched group axis --------------------
    # qkv columns are ordered (t, h, d) with t in {q,k,v}.  One reshape + one
    # einshape ("mhd->hmd", the documented pattern) + one bf16 cast replaces the
    # old per-head slicing / per-slice casts.
    qkv_g = qkv.reshape(M, 3 * H, hd)
    qkv_g = pltpu.einshape("mhd->hmd", qkv_g)                 # (3H, M, hd)
    qkv_g = qkv_g.reshape(3 * G, S, hd).astype(jnp.bfloat16)  # groups = (t, h, b)
    q_g = qkv_g[0:G]
    k_g = qkv_g[G:2 * G]
    v_g = qkv_g[2 * G:]

    # --- scaled dot-product attention, batched over all (head, batch) groups ---
    # (The 1/sqrt(head_dim) scale is folded into the q weight columns offline.)
    s = jnp.einsum('gqd,gkd->gqk', q_g, k_g,
                   preferred_element_type=jnp.float32)        # (G, S, S) f32
    s = s - jnp.max(s, axis=-1, keepdims=True)
    p = jnp.exp(s)
    p = p * pl.reciprocal(jnp.sum(p, axis=-1, keepdims=True), approx=True)
    o_g = jnp.einsum('gqk,gkd->gqd', p.astype(jnp.bfloat16), v_g,
                     preferred_element_type=jnp.float32)      # (G, S, hd) f32

    # Back to (M, C) with heads concatenated along channels (inverse einshape).
    attn = pltpu.einshape("hmd->mhd", o_g.reshape(H, M, hd)).reshape(M, C)

    # --- attention out_proj + residual (f32) -----------------------------------
    y = jnp.dot(attn.astype(jnp.bfloat16), wo_ref[0],
                preferred_element_type=jnp.float32) + bo_ref[0]
    new_act = y + x3.reshape(M, C)
    act_ref[...] = new_act.reshape(Bt, S, C)

    # --- last layer: fused weight-tied lm_head ---------------------------------
    # V is zero-padded to a multiple of 128 so the store is lane-dense/unmasked.
    # TODO(synk): for a real vocab, tile V over 128/256-wide column blocks on a
    # grid axis, use a flash-style KV-tiled attention for long S, and keep the
    # activation scratch in bf16 to fit v7x's 64 MiB VMEM.
    @pl.when(layer == L - 1)
    def _():
        o_ref[...] = jnp.dot(new_act.astype(jnp.bfloat16), embT_ref[...],
                             preferred_element_type=jnp.float32)


def conv_text_model_forward(input_ids, params, *, num_heads=4, batch_tile=None):
    """input_ids: (B, S) int32 -> logits (B, S, V) float32."""
    emb_weight, wf_all, bf_all, wo_all, bo_all, embT = params
    B, S = input_ids.shape
    V, C = emb_weight.shape
    Vp = embT.shape[1]                           # lane-dense padded vocab
    L = wf_all.shape[0]
    assert C % num_heads == 0

    # Batch tiling: at least two tiles when possible so the second TensorCore on
    # v7x is used ("parallel" axis); on 1-TC chips the tiles just run sequentially.
    if batch_tile is None:
        batch_tile = B // 2 if (B % 2 == 0 and B >= 2) else B
    assert B % batch_tile == 0
    Bt = batch_tile
    nb = B // Bt

    # Embedding lookup (data-dependent gather) is glue, done in plain JAX.
    x = emb_weight[input_ids]                                  # (B, S, C) f32

    # Explicit VMEM budget: resident act scratch + double-buffered pipelined blocks.
    est = (Bt * S * C * 4                                      # act scratch (f32)
           + 2 * (Bt * S * C * 4                               # x block
                  + (3 * C) * (3 * C) * 2 + (3 * C) * 4        # wf (bf16), bf (f32)
                  + C * C * 2 + C * 4                          # wo (bf16), bo (f32)
                  + C * Vp * 2                                 # embT (bf16)
                  + Bt * S * Vp * 4))                          # output block (f32)
    vmem_limit = int(min(100 * 2 ** 20, max(3 * est, 16 * 2 ** 20)))

    kernel = partial(_model_kernel, batch_tile=Bt, seq_len=S, channels=C,
                     num_heads=num_heads, num_layers=L)
    logits = pl.pallas_call(
        kernel,
        out_shape=jax.ShapeDtypeStruct((B * S, Vp), jnp.float32),
        grid=(nb, L),
        in_specs=[
            pl.BlockSpec((Bt, S, C),         lambda b, l: (b, 0, 0)),   # embedded tokens
            pl.BlockSpec((1, 3 * C, 3 * C),  lambda b, l: (l, 0, 0)),   # fused conv+in_proj W
            pl.BlockSpec((1, 1, 3 * C),      lambda b, l: (l, 0, 0)),   # fused bias
            pl.BlockSpec((1, C, C),          lambda b, l: (l, 0, 0)),   # out_proj.weight.T
            pl.BlockSpec((1, 1, C),          lambda b, l: (l, 0, 0)),   # out_proj.bias
            pl.BlockSpec((C, Vp),            lambda b, l: (0, 0)),      # padded lm_head W
        ],
        out_specs=pl.BlockSpec((Bt * S, Vp), lambda b, l: (b, 0)),
        scratch_shapes=[pltpu.VMEM((Bt, S, C), jnp.float32)],
        compiler_params=pltpu.CompilerParams(
            # batch tiles are independent (megacore on v7x); layers are sequential
            dimension_semantics=("parallel", "arbitrary"),
            vmem_limit_bytes=vmem_limit),
    )(x, wf_all, bf_all, wo_all, bo_all, embT)
    return logits[:, :V].reshape(B, S, V)


# ----------------------------------------------------------------------------
# Parameter initialization (deterministic, synthetic) + offline weight fusion.
# ----------------------------------------------------------------------------
def init_params(key, vocab_size, num_layers, num_channels, kernel_size=3, num_heads=4):
    C, K, V = num_channels, kernel_size, vocab_size
    assert C % num_heads == 0
    q_scale = 1.0 / math.sqrt(C // num_heads)    # folded into the fused q weights
    keys = jax.random.split(key, 1 + 6 * num_layers)
    emb_weight = 0.1 * jax.random.normal(keys[0], (V, C), jnp.float32)

    wf_list, bf_list, wo_list, bo_list = [], [], [], []
    for i in range(num_layers):
        k = keys[1 + 6 * i: 1 + 6 * (i + 1)]
        conv_w = (1.0 / math.sqrt(C * K)) * jax.random.normal(k[0], (3 * C, C, K), jnp.float32)
        conv_b = 0.01 * jax.random.normal(k[1], (3 * C,), jnp.float32)
        in_proj_w = (1.0 / math.sqrt(C)) * jax.random.normal(k[2], (3 * C, C), jnp.float32)
        in_proj_b = 0.01 * jax.random.normal(k[3], (3 * C,), jnp.float32)
        out_proj_w = (1.0 / math.sqrt(C)) * jax.random.normal(k[4], (C, C), jnp.float32)
        out_proj_b = 0.01 * jax.random.normal(k[5], (C,), jnp.float32)

        # Conv as shifted matmuls: wconv[k] = conv_w[:, :, k].T -> (K, Cin, 3C)
        wconv = jnp.transpose(conv_w, (2, 1, 0))
        winT = in_proj_w.T                                       # (C, 3C)

        # Fuse Conv1d -> attention in_proj per q/k/v column block (both linear):
        #   qp = sum_k x_shift_k @ (wconv[k][:, 0:C] @ Wq^T) + (conv_b[0:C] @ Wq^T + bq)
        blocks_w, blocks_b = [], []
        for j in range(3):                                       # q, k, v blocks
            csl = slice(j * C, (j + 1) * C)
            wj = winT[:, csl]                                    # (C, C)
            bw = jnp.einsum('kab,bc->kac', wconv[:, :, csl], wj)  # (K, C, C)
            bb = conv_b[csl] @ wj + in_proj_b[csl]                # (C,)
            if j == 0:                                           # fold attention scale into q
                bw = bw * q_scale
                bb = bb * q_scale
            blocks_w.append(bw)
            blocks_b.append(bb)
        wf_k = jnp.concatenate(blocks_w, axis=-1)                # (K, C, 3C)
        wf = wf_k.reshape(K * C, 3 * C)                          # taps stacked on K-axis
        bf = jnp.concatenate(blocks_b, axis=-1)                  # (3C,)

        wf_list.append(wf.astype(jnp.bfloat16))                  # bf16 matmul weights
        bf_list.append(bf.reshape(1, 3 * C))                     # f32 bias
        wo_list.append(out_proj_w.T.astype(jnp.bfloat16))        # (C, C) bf16
        bo_list.append(out_proj_b.reshape(1, C))                 # f32

    # Weight-tied lm_head, zero-padded to a lane-dense (multiple of 128) vocab.
    Vp = _round_up(V, 128)
    embT = jnp.zeros((C, Vp), jnp.float32).at[:, :V].set(emb_weight.T).astype(jnp.bfloat16)

    params = (emb_weight,
              jnp.stack(wf_list),                                # (L, 3C, 3C) bf16
              jnp.stack(bf_list),                                # (L, 1, 3C) f32
              jnp.stack(wo_list),                                # (L, C, C) bf16
              jnp.stack(bo_list),                                # (L, 1, C) f32
              embT)                                              # (C, Vp) bf16 lm_head
    return params


if __name__ == "__main__":
    VOCAB, NUM_LAYERS, CHANNELS = 32, 2, 32                      # 4 heads -> head_dim = 8
    B, S = 2, 16

    key = jax.random.PRNGKey(0)
    k_param, k_ids = jax.random.split(key)
    params = init_params(k_param, VOCAB, NUM_LAYERS, CHANNELS)
    input_ids = jax.random.randint(k_ids, (B, S), 0, VOCAB, dtype=jnp.int32)

    logits = conv_text_model_forward(input_ids, params)
    jax.block_until_ready(logits)
    assert logits.shape == (B, S, VOCAB) and logits.dtype == jnp.float32
    print("KERNEL_OK")
</pallas_src>

<mosaic_0001>
module attributes {stable_mosaic.version = 11 : i64} {
  func.func @_model_kernel(%arg0: i32, %arg1: i32, %arg2: memref<1x16x32xf32, #tpu.memory_space<vmem>>, %arg3: memref<1x96x96xbf16, #tpu.memory_space<vmem>>, %arg4: memref<1x1x96xf32, #tpu.memory_space<vmem>>, %arg5: memref<1x32x32xbf16, #tpu.memory_space<vmem>>, %arg6: memref<1x1x32xf32, #tpu.memory_space<vmem>>, %arg7: memref<32x128xbf16, #tpu.memory_space<vmem>>, %arg8: memref<16x128xf32, #tpu.memory_space<vmem>>, %arg9: memref<1x16x32xf32, #tpu.memory_space<vmem>>) attributes {dimension_semantics = [#tpu.dimension_semantics<parallel>, #tpu.dimension_semantics<arbitrary>], iteration_bounds = array<i64: 2, 2>, scalar_prefetch = 0 : i64, scratch_operands = 1 : i64, tpu.core_type = #tpu.core_type<tc>, window_params = [{transform_indices = @transform_0, window_bounds = array<i64: 1, 16, 32>}, {transform_indices = @transform_1, window_bounds = array<i64: 1, 96, 96>}, {transform_indices = @transform_2, window_bounds = array<i64: 1, 1, 96>}, {transform_indices = @transform_3, window_bounds = array<i64: 1, 32, 32>}, {transform_indices = @transform_4, window_bounds = array<i64: 1, 1, 32>}, {pipeline_mode = #tpu.pipeline_mode<synchronous>, transform_indices = @transform_5, window_bounds = array<i64: 32, 128>}, {transform_indices = @transform_6, window_bounds = array<i64: 16, 128>}]} {
    %c0_i32 = arith.constant 0 : i32
    %0 = arith.cmpi eq, %arg1, %c0_i32 : i32
    %1 = arith.extui %0 : i1 to i32
    %c0_i32_0 = arith.constant 0 : i32
    %2 = arith.cmpi ne, %1, %c0_i32_0 : i32
    scf.if %2 {
      %c0_31 = arith.constant 0 : index
      %c0_32 = arith.constant 0 : index
      %c0_33 = arith.constant 0 : index
      %75 = vector.load %arg2[%c0_31, %c0_32, %c0_33] : memref<1x16x32xf32, #tpu.memory_space<vmem>>, vector<1x16x32xf32>
      %c0_34 = arith.constant 0 : index
      %c0_35 = arith.constant 0 : index
      %c0_36 = arith.constant 0 : index
      %76 = vector.load %arg9[%c0_34, %c0_35, %c0_36] : memref<1x16x32xf32, #tpu.memory_space<vmem>>, vector<1x16x32xf32>
      tpu.vector_store %arg9[%c0_34, %c0_35, %c0_36], %75 {strides = array<i32>} : memref<1x16x32xf32, #tpu.memory_space<vmem>>, vector<1x16x32xf32>,
    } else {
    }
    %c0 = arith.constant 0 : index
    %c0_1 = arith.constant 0 : index
    %c0_2 = arith.constant 0 : index
    %3 = vector.load %arg9[%c0, %c0_1, %c0_2] : memref<1x16x32xf32, #tpu.memory_space<vmem>>, vector<1x16x32xf32>
    %4 = tpu.iota {dimensions = array<i32: 1>} : vector<1x16x1xi32>
    %c0_i32_3 = arith.constant 0 : i32
    %5 = vector.broadcast %c0_i32_3 : i32 to vector<1x16x1xi32>
    %6 = arith.cmpi eq, %4, %5 : vector<1x16x1xi32>
    %c1_i32 = arith.constant 1 : i32
    %7 = tpu.dynamic_rotate %3 by %c1_i32 dim 1 : vector<1x16x32xf32>, i32 -> vector<1x16x32xf32>
    %cst = arith.constant 0.000000e+00 : f32
    %8 = vector.shape_cast %6 : vector<1x16x1xi1> to vector<1x16x1xi1>
    %9 = vector.broadcast %8 : vector<1x16x1xi1> to vector<1x16x32xi1>
    %10 = vector.broadcast %cst : f32 to vector<1x16x32xf32>
    %11 = arith.select %9, %10, %7 : vector<1x16x32xi1>, vector<1x16x32xf32>
    %c15_i32 = arith.constant 15 : i32
    %12 = vector.broadcast %c15_i32 : i32 to vector<1x16x1xi32>
    %13 = arith.cmpi eq, %4, %12 : vector<1x16x1xi32>
    %c15_i32_4 = arith.constant 15 : i32
    %14 = tpu.dynamic_rotate %3 by %c15_i32_4 dim 1 : vector<1x16x32xf32>, i32 -> vector<1x16x32xf32>
    %cst_5 = arith.constant 0.000000e+00 : f32
    %15 = vector.shape_cast %13 : vector<1x16x1xi1> to vector<1x16x1xi1>
    %16 = vector.broadcast %15 : vector<1x16x1xi1> to vector<1x16x32xi1>
    %17 = vector.broadcast %cst_5 : f32 to vector<1x16x32xf32>
    %18 = arith.select %16, %17, %14 : vector<1x16x32xi1>, vector<1x16x32xf32>
    %c0_6 = arith.constant 0 : index
    %c0_7 = arith.constant 0 : index
    %c0_8 = arith.constant 0 : index
    %19 = vector.load %arg3[%c0_6, %c0_7, %c0_8] : memref<1x96x96xbf16, #tpu.memory_space<vmem>>, vector<1x96x96xbf16>
    %20 = vector.shape_cast %19 : vector<1x96x96xbf16> to vector<96x96xbf16>
    %21 = vector.shape_cast %11 : vector<1x16x32xf32> to vector<16x32xf32>
    %22 = arith.truncf %21 : vector<16x32xf32> to vector<16x32xbf16>
    %23 = vector.extract_strided_slice %20 {offsets = [0, 0], sizes = [32, 96], strides = [1, 1]} : vector<96x96xbf16> to vector<32x96xbf16>
    %cst_9 = arith.constant dense<0.000000e+00> : vector<16x96xf32>
    %24 = tpu.matmul %22, %23, %cst_9 {dimension_numbers = #tpu.dot_dimension_numbers<[1], [0], [0], [1], [0, 0, 1, 1], [], []>} : vector<16x32xbf16>, vector<32x96xbf16>, vector<16x96xf32> -> vector<16x96xf32>
    %25 = vector.shape_cast %3 : vector<1x16x32xf32> to vector<16x32xf32>
    %26 = arith.truncf %25 : vector<16x32xf32> to vector<16x32xbf16>
    %27 = vector.extract_strided_slice %20 {offsets = [32, 0], sizes = [32, 96], strides = [1, 1]} : vector<96x96xbf16> to vector<32x96xbf16>
    %cst_10 = arith.constant dense<0.000000e+00> : vector<16x96xf32>
    %28 = tpu.matmul %26, %27, %cst_10 {dimension_numbers = #tpu.dot_dimension_numbers<[1], [0], [0], [1], [0, 0, 1, 1], [], []>} : vector<16x32xbf16>, vector<32x96xbf16>, vector<16x96xf32> -> vector<16x96xf32>
    %29 = arith.addf %24, %28 : vector<16x96xf32>
    %30 = vector.shape_cast %18 : vector<1x16x32xf32> to vector<16x32xf32>
    %31 = arith.truncf %30 : vector<16x32xf32> to vector<16x32xbf16>
    %32 = vector.extract_strided_slice %20 {offsets = [64, 0], sizes = [32, 96], strides = [1, 1]} : vector<96x96xbf16> to vector<32x96xbf16>
    %cst_11 = arith.constant dense<0.000000e+00> : vector<16x96xf32>
    %33 = tpu.matmul %31, %32, %cst_11 {dimension_numbers = #tpu.dot_dimension_numbers<[1], [0], [0], [1], [0, 0, 1, 1], [], []>} : vector<16x32xbf16>, vector<32x96xbf16>, vector<16x96xf32> -> vector<16x96xf32>
    %34 = arith.addf %29, %33 : vector<16x96xf32>
    %c0_12 = arith.constant 0 : index
    %c0_13 = arith.constant 0 : index
    %c0_14 = arith.constant 0 : index
    %35 = vector.load %arg4[%c0_12, %c0_13, %c0_14] : memref<1x1x96xf32, #tpu.memory_space<vmem>>, vector<1x1x96xf32>
    %36 = vector.shape_cast %35 : vector<1x1x96xf32> to vector<1x96xf32>
    %37 = vector.broadcast %36 : vector<1x96xf32> to vector<16x96xf32>
    %38 = arith.addf %34, %37 : vector<16x96xf32>
    %39 = vector.shape_cast %38 : vector<16x96xf32> to vector<16x12x8xf32>
    %40 = tpu.transpose %39, [1, 0, 2] : vector<16x12x8xf32> -> vector<12x16x8xf32>
    %41 = arith.truncf %40 : vector<12x16x8xf32> to vector<12x16x8xbf16>
    %42 = vector.extract_strided_slice %41 {offsets = [0, 0, 0], sizes = [4, 16, 8], strides = [1, 1, 1]} : vector<12x16x8xbf16> to vector<4x16x8xbf16>
    %43 = vector.extract_strided_slice %41 {offsets = [4, 0, 0], sizes = [4, 16, 8], strides = [1, 1, 1]} : vector<12x16x8xbf16> to vector<4x16x8xbf16>
    %44 = vector.extract_strided_slice %41 {offsets = [8, 0, 0], sizes = [4, 16, 8], strides = [1, 1, 1]} : vector<12x16x8xbf16> to vector<4x16x8xbf16>
    "tpu.trace_start"() <{level = 10 : i32, message = "gqd,gkd->gqk"}> : () -> ()
    %cst_15 = arith.constant dense<0.000000e+00> : vector<4x16x16xf32>
    %45 = tpu.matmul %42, %43, %cst_15 {dimension_numbers = #tpu.dot_dimension_numbers<[2], [2], [1], [1], [0, 0, 0, 1, 1, 1], [0], [0]>} : vector<4x16x8xbf16>, vector<4x16x8xbf16>, vector<4x16x16xf32> -> vector<4x16x16xf32>
    "tpu.trace_stop"() : () -> ()
    %cst_16 = arith.constant dense<0xFF800000> : vector<4x16xf32>
    %46 = vector.multi_reduction <maximumf>, %45, %cst_16 [2] : vector<4x16x16xf32> to vector<4x16xf32>
    %47 = vector.shape_cast %46 : vector<4x16xf32> to vector<4x16x1xf32>
    %48 = vector.broadcast %47 : vector<4x16x1xf32> to vector<4x16x16xf32>
    %49 = arith.subf %45, %48 : vector<4x16x16xf32>
    %50 = math.exp %49 : vector<4x16x16xf32>
    %cst_17 = arith.constant dense<0.000000e+00> : vector<4x16xf32>
    %51 = vector.multi_reduction <add>, %50, %cst_17 [2] : vector<4x16x16xf32> to vector<4x16xf32>
    %52 = vector.shape_cast %51 : vector<4x16xf32> to vector<4x16x1xf32>
    %53 = tpu.reciprocal %52 {approx = true} : vector<4x16x1xf32> -> vector<4x16x1xf32>
    %54 = vector.broadcast %53 : vector<4x16x1xf32> to vector<4x16x16xf32>
    %55 = arith.mulf %50, %54 : vector<4x16x16xf32>
    %56 = arith.truncf %55 : vector<4x16x16xf32> to vector<4x16x16xbf16>
    "tpu.trace_start"() <{level = 10 : i32, message = "gqk,gkd->gqd"}> : () -> ()
    %cst_18 = arith.constant dense<0.000000e+00> : vector<4x16x8xf32>
    %57 = tpu.matmul %56, %44, %cst_18 {dimension_numbers = #tpu.dot_dimension_numbers<[2], [1], [1], [2], [0, 0, 0, 1, 1, 2], [0], [0]>} : vector<4x16x16xbf16>, vector<4x16x8xbf16>, vector<4x16x8xf32> -> vector<4x16x8xf32>
    "tpu.trace_stop"() : () -> ()
    %58 = tpu.transpose %57, [1, 0, 2] : vector<4x16x8xf32> -> vector<16x4x8xf32>
    %59 = vector.shape_cast %58 : vector<16x4x8xf32> to vector<16x32xf32>
    %60 = arith.truncf %59 : vector<16x32xf32> to vector<16x32xbf16>
    %c0_19 = arith.constant 0 : index
    %c0_20 = arith.constant 0 : index
    %c0_21 = arith.constant 0 : index
    %61 = vector.load %arg5[%c0_19, %c0_20, %c0_21] : memref<1x32x32xbf16, #tpu.memory_space<vmem>>, vector<1x32x32xbf16>
    %62 = vector.shape_cast %61 : vector<1x32x32xbf16> to vector<32x32xbf16>
    %cst_22 = arith.constant dense<0.000000e+00> : vector<16x32xf32>
    %63 = tpu.matmul %60, %62, %cst_22 {dimension_numbers = #tpu.dot_dimension_numbers<[1], [0], [0], [1], [0, 0, 1, 1], [], []>} : vector<16x32xbf16>, vector<32x32xbf16>, vector<16x32xf32> -> vector<16x32xf32>
    %c0_23 = arith.constant 0 : index
    %c0_24 = arith.constant 0 : index
    %c0_25 = arith.constant 0 : index
    %64 = vector.load %arg6[%c0_23, %c0_24, %c0_25] : memref<1x1x32xf32, #tpu.memory_space<vmem>>, vector<1x1x32xf32>
    %65 = vector.shape_cast %64 : vector<1x1x32xf32> to vector<1x32xf32>
    %66 = vector.broadcast %65 : vector<1x32xf32> to vector<16x32xf32>
    %67 = arith.addf %63, %66 : vector<16x32xf32>
    %68 = vector.shape_cast %3 : vector<1x16x32xf32> to vector<16x32xf32>
    %69 = arith.addf %67, %68 : vector<16x32xf32>
    %70 = vector.shape_cast %69 : vector<16x32xf32> to vector<1x16x32xf32>
    %c0_26 = arith.constant 0 : index
    %c0_27 = arith.constant 0 : index
    %c0_28 = arith.constant 0 : index
    %71 = vector.load %arg9[%c0_26, %c0_27, %c0_28] : memref<1x16x32xf32, #tpu.memory_space<vmem>>, vector<1x16x32xf32>
    tpu.vector_store %arg9[%c0_26, %c0_27, %c0_28], %70 {strides = array<i32>} : memref<1x16x32xf32, #tpu.memory_space<vmem>>, vector<1x16x32xf32>,
    %c1_i32_29 = arith.constant 1 : i32
    %72 = arith.cmpi eq, %arg1, %c1_i32_29 : i32
    %73 = arith.extui %72 : i1 to i32
    %c0_i32_30 = arith.constant 0 : i32
    %74 = arith.cmpi ne, %73, %c0_i32_30 : i32
    scf.if %74 {
      %75 = arith.truncf %69 : vector<16x32xf32> to vector<16x32xbf16>
      %c0_31 = arith.constant 0 : index
      %c0_32 = arith.constant 0 : index
      %76 = vector.load %arg7[%c0_31, %c0_32] : memref<32x128xbf16, #tpu.memory_space<vmem>>, vector<32x128xbf16>
      %cst_33 = arith.constant dense<0.000000e+00> : vector<16x128xf32>
      %77 = tpu.matmul %75, %76, %cst_33 {dimension_numbers = #tpu.dot_dimension_numbers<[1], [0], [0], [1], [0, 0, 1, 1], [], []>} : vector<16x32xbf16>, vector<32x128xbf16>, vector<16x128xf32> -> vector<16x128xf32>
      %c0_34 = arith.constant 0 : index
      %c0_35 = arith.constant 0 : index
      %78 = vector.load %arg8[%c0_34, %c0_35] : memref<16x128xf32, #tpu.memory_space<vmem>>, vector<16x128xf32>
      tpu.vector_store %arg8[%c0_34, %c0_35], %77 {strides = array<i32>} : memref<16x128xf32, #tpu.memory_space<vmem>>, vector<16x128xf32>,
    } else {
    }
    return
  }
  func.func @transform_0(%arg0: i32, %arg1: i32) -> (i32, i32, i32) {
    %c0_i32 = arith.constant 0 : i32
    %c0_i32_0 = arith.constant 0 : i32
    %c0_i32_1 = arith.constant 0 : i32
    return %arg0, %c0_i32, %c0_i32_0 : i32, i32, i32
  }
  func.func @transform_1(%arg0: i32, %arg1: i32) -> (i32, i32, i32) {
    %c0_i32 = arith.constant 0 : i32
    %c0_i32_0 = arith.constant 0 : i32
    %c0_i32_1 = arith.constant 0 : i32
    return %arg1, %c0_i32, %c0_i32_0 : i32, i32, i32
  }
  func.func @transform_2(%arg0: i32, %arg1: i32) -> (i32, i32, i32) {
    %c0_i32 = arith.constant 0 : i32
    %c0_i32_0 = arith.constant 0 : i32
    %c0_i32_1 = arith.constant 0 : i32
    return %arg1, %c0_i32, %c0_i32_0 : i32, i32, i32
  }
  func.func @transform_3(%arg0: i32, %arg1: i32) -> (i32, i32, i32) {
    %c0_i32 = arith.constant 0 : i32
    %c0_i32_0 = arith.constant 0 : i32
    %c0_i32_1 = arith.constant 0 : i32
    return %arg1, %c0_i32, %c0_i32_0 : i32, i32, i32
  }
  func.func @transform_4(%arg0: i32, %arg1: i32) -> (i32, i32, i32) {
    %c0_i32 = arith.constant 0 : i32
    %c0_i32_0 = arith.constant 0 : i32
    %c0_i32_1 = arith.constant 0 : i32
    return %arg1, %c0_i32, %c0_i32_0 : i32, i32, i32
  }
  func.func @transform_5(%arg0: i32, %arg1: i32) -> (i32, i32) {
    %c0_i32 = arith.constant 0 : i32
    %c0_i32_0 = arith.constant 0 : i32
    %c0_i32_1 = arith.constant 0 : i32
    return %c0_i32, %c0_i32_0 : i32, i32
  }
  func.func @transform_6(%arg0: i32, %arg1: i32) -> (i32, i32) {
    %c0_i32 = arith.constant 0 : i32
    %c0_i32_0 = arith.constant 0 : i32
    return %arg0, %c0_i32 : i32, i32
  }
}

</mosaic_0001>

<llo_original>
// kernel: tpu_custom_call.1
$region0: #{tpu_custom_call.1}
  #allocation0 [shape = 'u32[]', space=smem, size = 0x4, offset = 0x4, fixed_abs, tag = 'smem constant byte address 0x4 - core index']
  #allocation1 [shape = 'u32[144,128]{1,0:T(1,128)}', space=vmem, size = 0x12000, scoped, tag = 'internal scratch']
  #allocation2 [shape = 'f32[1,16,32]{2,1,0:T(8,128)}', space=vmem, size = 0x2000, scoped, tag = 'scratch operand']
  %s0 = inlined_call_operand.hbm [shape: f32[2,16,32], index: 0, kind: input, shape index: {}]
  %s1 = inlined_call_operand.hbm [shape: bf16[2,96,96], index: 1, kind: input, shape index: {}]
  %s2 = inlined_call_operand.vmem [shape: f32[2,1,96], index: 2, kind: input, shape index: {}]
  %s3 = inlined_call_operand.hbm [shape: bf16[2,32,32], index: 3, kind: input, shape index: {}]
  %s4 = inlined_call_operand.hbm [shape: f32[2,1,32], index: 4, kind: input, shape index: {}]
  %s5 = inlined_call_operand.vmem [shape: bf16[32,128], index: 5, kind: input, shape index: {}]
  %s6 = inlined_call_operand.hbm [shape: f32[32,128], index: 6, kind: output, shape index: {}]
  %s7 = sld [smem:[#allocation0]]
  $region81: #{tpu_custom_call.1} parent=0
    _
  %s9 = ssub.s32 1, %s7
  %s10 = scalar_select 0, %s9, %s7
  $region1: #{tpu_custom_call.1} parent=0
    #allocation3 [shape = 'u8[16384]{0}', space=vmem, size = 0x4000, scoped, tag = 'input window, operand 0']
    #allocation4 [shape = 's32[2]{0}', space=sflag, size = 0x8, scoped, tag = 'scoped memory for tpu_custom_call.1']
    #allocation5 [shape = 's32[2]{0}', space=sflag, size = 0x8, scoped, tag = 'scoped memory for tpu_custom_call.1']
    #allocation6 [shape = 'u8[49152]{0}', space=vmem, size = 0xc000, scoped, tag = 'input window, operand 1']
    #allocation7 [shape = 's32[2]{0}', space=sflag, size = 0x8, scoped, tag = 'scoped memory for tpu_custom_call.1']
    #allocation8 [shape = 'u8[16384]{0}', space=vmem, size = 0x4000, scoped, tag = 'input window, operand 3']
    #allocation9 [shape = 'u8[1024]{0}', space=vmem, size = 0x400, scoped, tag = 'input window, operand 4']
    #allocation10 [shape = 's32[2]{0}', space=sflag, size = 0x8, scoped, tag = 'scoped memory for tpu_custom_call.1']
    #allocation11 [shape = 'u8[16384]{0}', space=vmem, size = 0x4000, scoped, tag = 'output window, operand 0']
    %11 = vsyncpa [#allocation4], 0
    %s12 = scalar_lea.sflag [#allocation4], 1
    %13 = vsyncpa %s12, 0
    %14 = vsyncpa [#allocation7], 0
    %s15 = scalar_lea.sflag [#allocation7], 1
    %16 = vsyncpa %s15, 0
    %17 = vsyncpa [#allocation10], 0
    %s18 = scalar_lea.sflag [#allocation10], 1
    %19 = vsyncpa %s18, 0
    %20 = vsyncpa [#allocation5], 0
    %s21 = scalar_lea.sflag [#allocation5], 1
    %22 = vsyncpa %s21, 0
    loop: start=0, step=1, limit=6
    $region2: #{tpu_custom_call.1} parent=1 // loop_pre_header
      _
    $region3: #{tpu_custom_call.1} parent=1 // loop_header
      %s24 = sphi 0, %s28
      %p25 = scmp.ge.s32.totalorder %s24, 6
      %s31 = sphi 0, %s43
      %s32 = sphi 0, %s39
      %s33 = sphi 0, %s31
      %s34 = sphi 0, %s32
      %s35 = sphi 0, %s33
      %s36 = sphi 0, %s34
      %s46 = sphi 0, %s48
      %s49 = sphi 0, %s46
      %s50 = sphi 0, %s49
      %s66 = sphi 0, %s50
      %s72 = sphi 0, %s74
      %s75 = sphi 0, %s72
      %s76 = sphi 0, %s75
      %s92 = sphi 0, %s76
      %s98 = sphi 0, %s100
      %s101 = sphi 0, %s98
      %s102 = sphi 0, %s101
      %s118 = sphi 0, %s102
      %s124 = sphi 0, %s126
      %s127 = sphi 0, %s124
      %s128 = sphi 0, %s127
      %s144 = sphi 0, %s128
      %s150 = sphi 0, %s152
      %s153 = sphi 0, %s150
      %s154 = sphi 0, %s153
      %s170 = sphi 0, %s154
      %s174 = sphi 0, %s174
      %s176 = sphi 0, %s174
      %s177 = sphi 0, %s176
      %s191 = sphi 0, %s177
      %s197 = sphi 0, %s199
      %s200 = sphi 0, %s197
      %s201 = sphi 0, %s200
      %s217 = sphi 0, %s201
    $region4: #{tpu_custom_call.1} parent=1 // loop_header_branch
      %27 = sbr.rel (%p25) target = $region8
    $region5: #{tpu_custom_call.1} parent=1 // loop_body
      %s29 = ssub.s32 %s24, 1
      %s30 = ssub.s32 %s24, 2
      %s37 = sadd.s32 1, %s32
      %p38 = scmp.ge.s32.totalorder %s37, 2
      %s39 = scalar_select %p38, 0, %s37
      %s40 = sadd.s32 1, %s31
      %s41 = scalar_select %p38, %s40, %s31
      %p42 = scmp.ge.s32.totalorder %s41, 2
      %s43 = scalar_select %p42, 0, %s41
      %s44 = ssub.s32 %s31, %s43
      %p45 = scmp.eq.s32.totalorder %s44, 0
      %s47 = sadd.s32 %s46, 1
      %s48 = scalar_select %p45, %s46, %s47
      %p51 = pneg %p45
      %p52 = scmp.eq.s32.totalorder %s24, 3
      %p53 = por %p51, %p52
      %p54 = scmp.ne.s32.totalorder %s46, %s49
      %p55 = scmp.eq.s32.totalorder %s24, 0
      %p56 = por %p54, %p55
      %p57 = scmp.ne.s32.totalorder %s46, %s49
      %p58 = scmp.eq.s32.totalorder %s29, 3
      %p59 = por %p57, %p58
      %p60 = scmp.ne.s32.totalorder %s49, %s50
      %p61 = scmp.eq.s32.totalorder %s29, 0
      %p62 = por %p60, %p61
      %p63 = scmp.ne.s32.totalorder %s49, %s50
      %p64 = scmp.eq.s32.totalorder %s30, 3
      %p65 = por %p63, %p64
      %p67 = scmp.ne.s32.totalorder %s50, %s66
      %p68 = scmp.eq.s32.totalorder %s30, 0
      %p69 = por %p67, %p68
      %s70 = ssub.s32 %s32, %s39
      %p71 = scmp.eq.s32.totalorder %s70, 0
      %s73 = sadd.s32 %s72, 1
      %s74 = scalar_select %p71, %s72, %s73
      %p77 = pneg %p71
      %p78 = scmp.eq.s32.totalorder %s24, 3
      %p79 = por %p77, %p78
      %p80 = scmp.ne.s32.totalorder %s72, %s75
      %p81 = scmp.eq.s32.totalorder %s24, 0
      %p82 = por %p80, %p81
      %p83 = scmp.ne.s32.totalorder %s72, %s75
      %p84 = scmp.eq.s32.totalorder %s29, 3
      %p85 = por %p83, %p84
      %p86 = scmp.ne.s32.totalorder %s75, %s76
      %p87 = scmp.eq.s32.totalorder %s29, 0
      %p88 = por %p86, %p87
      %p89 = scmp.ne.s32.totalorder %s75, %s76
      %p90 = scmp.eq.s32.totalorder %s30, 3
      %p91 = por %p89, %p90
      %p93 = scmp.ne.s32.totalorder %s76, %s92
      %p94 = scmp.eq.s32.totalorder %s30, 0
      %p95 = por %p93, %p94
      %s96 = ssub.s32 %s32, %s39
      %p97 = scmp.eq.s32.totalorder %s96, 0
      %s99 = sadd.s32 %s98, 1
      %s100 = scalar_select %p97, %s98, %s99
      %p103 = pneg %p97
      %p104 = scmp.eq.s32.totalorder %s24, 3
      %p105 = por %p103, %p104
      %p106 = scmp.ne.s32.totalorder %s98, %s101
      %p107 = scmp.eq.s32.totalorder %s24, 0
      %p108 = por %p106, %p107
      %p109 = scmp.ne.s32.totalorder %s98, %s101
      %p110 = scmp.eq.s32.totalorder %s29, 3
      %p111 = por %p109, %p110
      %p112 = scmp.ne.s32.totalorder %s101, %s102
      %p113 = scmp.eq.s32.totalorder %s29, 0
      %p114 = por %p112, %p113
      %p115 = scmp.ne.s32.totalorder %s101, %s102
      %p116 = scmp.eq.s32.totalorder %s30, 3
      %p117 = por %p115, %p116
      %p119 = scmp.ne.s32.totalorder %s102, %s118
      %p120 = scmp.eq.s32.totalorder %s30, 0
      %p121 = por %p119, %p120
      %s122 = ssub.s32 %s32, %s39
      %p123 = scmp.eq.s32.totalorder %s122, 0
      %s125 = sadd.s32 %s124, 1
      %s126 = scalar_select %p123, %s124, %s125
      %p129 = pneg %p123
      %p130 = scmp.eq.s32.totalorder %s24, 3
      %p131 = por %p129, %p130
      %p132 = scmp.ne.s32.totalorder %s124, %s127
      %p133 = scmp.eq.s32.totalorder %s24, 0
      %p134 = por %p132, %p133
      %p135 = scmp.ne.s32.totalorder %s124, %s127
      %p136 = scmp.eq.s32.totalorder %s29, 3
      %p137 = por %p135, %p136
      %p138 = scmp.ne.s32.totalorder %s127, %s128
      %p139 = scmp.eq.s32.totalorder %s29, 0
      %p140 = por %p138, %p139
      %p141 = scmp.ne.s32.totalorder %s127, %s128
      %p142 = scmp.eq.s32.totalorder %s30, 3
      %p143 = por %p141, %p142
      %p145 = scmp.ne.s32.totalorder %s128, %s144
      %p146 = scmp.eq.s32.totalorder %s30, 0
      %p147 = por %p145, %p146
      %s148 = ssub.s32 %s32, %s39
      %p149 = scmp.eq.s32.totalorder %s148, 0
      %s151 = sadd.s32 %s150, 1
      %s152 = scalar_select %p149, %s150, %s151
      %p155 = pneg %p149
      %p156 = scmp.eq.s32.totalorder %s24, 3
      %p157 = por %p155, %p156
      %p158 = scmp.ne.s32.totalorder %s150, %s153
      %p159 = scmp.eq.s32.totalorder %s24, 0
      %p160 = por %p158, %p159
      %p161 = scmp.ne.s32.totalorder %s150, %s153
      %p162 = scmp.eq.s32.totalorder %s29, 3
      %p163 = por %p161, %p162
      %p164 = scmp.ne.s32.totalorder %s153, %s154
      %p165 = scmp.eq.s32.totalorder %s29, 0
      %p166 = por %p164, %p165
      %p167 = scmp.ne.s32.totalorder %s153, %s154
      %p168 = scmp.eq.s32.totalorder %s30, 3
      %p169 = por %p167, %p168
      %p171 = scmp.ne.s32.totalorder %s154, %s170
      %p172 = scmp.eq.s32.totalorder %s30, 0
      %p173 = por %p171, %p172
      %s175 = sadd.s32 %s174, 1
      %p178 = scmp.eq.s32.totalorder %s24, 3
      %p179 = scmp.ne.s32.totalorder %s174, %s176
      %p180 = scmp.eq.s32.totalorder %s24, 0
      %p181 = por %p179, %p180
      %p182 = scmp.ne.s32.totalorder %s174, %s176
      %p183 = scmp.eq.s32.totalorder %s29, 3
      %p184 = por %p182, %p183
      %p185 = scmp.ne.s32.totalorder %s176, %s177
      %p186 = scmp.eq.s32.totalorder %s29, 0
      %p187 = por %p185, %p186
      %p188 = scmp.ne.s32.totalorder %s176, %s177
      %p189 = scmp.eq.s32.totalorder %s30, 3
      %p190 = por %p188, %p189
      %p192 = scmp.ne.s32.totalorder %s177, %s191
      %p193 = scmp.eq.s32.totalorder %s30, 0
      %p194 = por %p192, %p193
      %s195 = ssub.s32 %s31, %s43
      %p196 = scmp.eq.s32.totalorder %s195, 0
      %s198 = sadd.s32 %s197, 1
      %s199 = scalar_select %p196, %s197, %s198
      %p202 = pneg %p196
      %p203 = scmp.eq.s32.totalorder %s24, 3
      %p204 = por %p202, %p203
      %p205 = scmp.ne.s32.totalorder %s197, %s200
      %p206 = scmp.eq.s32.totalorder %s24, 0
      %p207 = por %p205, %p206
      %p208 = scmp.ne.s32.totalorder %s197, %s200
      %p209 = scmp.eq.s32.totalorder %s29, 3
      %p210 = por %p208, %p209
      %p211 = scmp.ne.s32.totalorder %s200, %s201
      %p212 = scmp.eq.s32.totalorder %s29, 0
      %p213 = por %p211, %p212
      %p214 = scmp.ne.s32.totalorder %s200, %s201
      %p215 = scmp.eq.s32.totalorder %s30, 3
      %p216 = por %p214, %p215
      %p218 = scmp.ne.s32.totalorder %s201, %s217
      %p219 = scmp.eq.s32.totalorder %s30, 0
      %p220 = por %p218, %p219
      %p221 = scmp.le.s32.totalorder 1, %s24
      %p222 = scmp.lt.s32.totalorder %s24, 5
      %p223 = pnand %p221, %p222
      %p224 = pneg %p223
      // Predicated region
      $region9: #{tpu_custom_call.1} parent=5 // pred_check
        _
      $region10: #{tpu_custom_call.1} parent=5 // pred_check_branch
        %226 = sbr.rel (%p223) target = $region12
      $region11: #{tpu_custom_call.1} parent=5 // pred_region
        %s227 = ssub.s32 %s24, 1
        // Predicated region
        $region13: #{tpu_custom_call.1} parent=11 // pred_check
          %p228 = pneg %p187
        $region14: #{tpu_custom_call.1} parent=11 // pred_check_branch
          %230 = sbr.rel (%p228) target = $region16
        $region15: #{tpu_custom_call.1} parent=11 // pred_region
          _
        $region16: #{tpu_custom_call.1} parent=11 // pred_fallthru
          _
      $region12: #{tpu_custom_call.1} parent=5 // pred_fallthru
        _
      %p231 = scmp.lt.s32.totalorder %s24, 4
      // Predicated region
      $region17: #{tpu_custom_call.1} parent=5 // pred_check
        %p232 = pneg %p231
      $region18: #{tpu_custom_call.1} parent=5 // pred_check_branch
        %234 = sbr.rel (%p232) target = $region20
      $region19: #{tpu_custom_call.1} parent=5 // pred_region
        // Predicated region
        $region21: #{tpu_custom_call.1} parent=19 // pred_check
          %p235 = pneg %p56
        $region22: #{tpu_custom_call.1} parent=19 // pred_check_branch
          %237 = sbr.rel (%p235) target = $region24
        $region23: #{tpu_custom_call.1} parent=19 // pred_region
          %s238 = sand.u32 %s46, 1
          %s239 = scalar_lea.sflag [#allocation4], %s238
          %s240 = sand.u32 %s46, 1
          %s241 = smul.addr %s240, 16
          %s242 = scalar_lea.vmem [#allocation3], %s241
          %s244 = ssub.s32 256, 256
          %245 = vsyncadd %s239, %s244
          %s246 = smul.addr %s31, 2
          %s247 = smul.addr %s246, 128
          %s248 = scalar_lea.hbm %s0, %s247
          %s249 = sshll.u32 %s242, 4
          %s250 = int_to_ptr.vmem [resolvable:$true] %s249
          %255 = dma.hbm_to_vmem [thread:$0]  %s248, 256, %s250, %s239, 128, 128, 8
        $region24: #{tpu_custom_call.1} parent=19 // pred_fallthru
          _
        // Predicated region
        $region25: #{tpu_custom_call.1} parent=19 // pred_check
          %p256 = pneg %p82
        $region26: #{tpu_custom_call.1} parent=19 // pred_check_branch
          %258 = sbr.rel (%p256) target = $region28
        $region27: #{tpu_custom_call.1} parent=19 // pred_region
          %s259 = sand.u32 %s24, 1
          %s260 = scalar_lea.sflag [#allocation7], %s259
          %s261 = sand.u32 %s72, 1
          %s262 = smul.addr %s261, 48
          %s263 = scalar_lea.vmem [#allocation6], %s262
          %s265 = ssub.s32 768, 768
          %266 = vsyncadd %s260, %s265
          %s267 = smul.addr %s32, 12
          %s268 = smul.addr %s267, 64
          %s269 = scalar_lea.hbm %s1, %s268
          %s270 = sshll.u32 %s263, 4
          %s271 = int_to_ptr.vmem [resolvable:$true] %s270
          %276 = dma.hbm_to_vmem [thread:$0]  %s269, 768, %s271, %s260, 64, 64, 4
        $region28: #{tpu_custom_call.1} parent=19 // pred_fallthru
          _
        // Predicated region
        $region29: #{tpu_custom_call.1} parent=19 // pred_check
          %p277 = pneg %p108
        $region30: #{tpu_custom_call.1} parent=19 // pred_check_branch
          %279 = sbr.rel (%p277) target = $region32
        $region31: #{tpu_custom_call.1} parent=19 // pred_region
          %p280 = scmp.lt.s32.totalorder %s32, 1
          %s281 = scalar_select %p280, %s32, 1
          %s282 = scalar_lea.vmem %s2, %s281
        $region32: #{tpu_custom_call.1} parent=19 // pred_fallthru
          _
        // Predicated region
        $region33: #{tpu_custom_call.1} parent=19 // pred_check
          %p283 = pneg %p134
        $region34: #{tpu_custom_call.1} parent=19 // pred_check_branch
          %285 = sbr.rel (%p283) target = $region36
        $region35: #{tpu_custom_call.1} parent=19 // pred_region
          %s286 = sand.u32 %s24, 1
          %s287 = scalar_lea.sflag [#allocation7], %s286
          %s288 = sand.u32 %s124, 1
          %s289 = smul.addr %s288, 16
          %s290 = scalar_lea.vmem [#allocation8], %s289
          %s292 = ssub.s32 256, 256
          %293 = vsyncadd %s287, %s292
          %s294 = smul.addr %s32, 4
          %s295 = smul.addr %s294, 64
          %s296 = scalar_lea.hbm %s3, %s295
          %s297 = sshll.u32 %s290, 4
          %s298 = int_to_ptr.vmem [resolvable:$true] %s297
          %303 = dma.hbm_to_vmem [thread:$0]  %s296, 256, %s298, %s287, 64, 64, 4
        $region36: #{tpu_custom_call.1} parent=19 // pred_fallthru
          _
        // Predicated region
        $region37: #{tpu_custom_call.1} parent=19 // pred_check
          %p304 = pneg %p160
        $region38: #{tpu_custom_call.1} parent=19 // pred_check_branch
          %306 = sbr.rel (%p304) target = $region40
        $region39: #{tpu_custom_call.1} parent=19 // pred_region
          %s307 = sand.u32 %s150, 1
          %s308 = scalar_lea.sflag [#allocation10], %s307
          %s309 = sand.u32 %s150, 1
          %s310 = scalar_lea.vmem [#allocation9], %s309
          %s312 = ssub.s32 16, 16
          %313 = vsyncadd %s308, %s312
          %s314 = smul.addr %s32, 16
          %s315 = scalar_lea.hbm %s4, %s314
          %s317 = sshll.u32 %s310, 4
          %s318 = int_to_ptr.vmem [resolvable:$true] %s317
          %320 = dma.hbm_to_vmem [thread:$0]  %s315, 16, %s318, %s308
        $region40: #{tpu_custom_call.1} parent=19 // pred_fallthru
          _
      $region20: #{tpu_custom_call.1} parent=5 // pred_fallthru
        _
      %p321 = scmp.le.s32.totalorder 1, %s24
      %p322 = scmp.lt.s32.totalorder %s24, 5
      %p323 = pnand %p321, %p322
      %p324 = pneg %p323
      // Predicated region
      $region41: #{tpu_custom_call.1} parent=5 // pred_check
        _
      $region42: #{tpu_custom_call.1} parent=5 // pred_check_branch
        %326 = sbr.rel (%p323) target = $region44
      $region43: #{tpu_custom_call.1} parent=5 // pred_region
        %s327 = ssub.s32 %s24, 1
        %s328 = sand.u32 %s49, 1
        %s329 = scalar_lea.sflag [#allocation4], %s328
        %s330 = sand.u32 %s49, 1
        %s331 = smul.addr %s330, 16
        %s332 = scalar_lea.vmem [#allocation3], %s331
        // Predicated region
        $region45: #{tpu_custom_call.1} parent=43 // pred_check
          %p333 = pneg %p62
        $region46: #{tpu_custom_call.1} parent=43 // pred_check_branch
          %335 = sbr.rel (%p333) target = $region48
        $region47: #{tpu_custom_call.1} parent=43 // pred_region
          %336 = dma.done %s329, 256
        $region48: #{tpu_custom_call.1} parent=43 // pred_fallthru
          _
        %s337 = sand.u32 %s29, 1
        %s338 = scalar_lea.sflag [#allocation7], %s337
        %s339 = sand.u32 %s75, 1
        %s340 = smul.addr %s339, 48
        %s341 = scalar_lea.vmem [#allocation6], %s340
        // Predicated region
        $region49: #{tpu_custom_call.1} parent=43 // pred_check
          %p342 = pneg %p88
        $region50: #{tpu_custom_call.1} parent=43 // pred_check_branch
          %344 = sbr.rel (%p342) target = $region52
        $region51: #{tpu_custom_call.1} parent=43 // pred_region
          %345 = dma.done %s338, 768
        $region52: #{tpu_custom_call.1} parent=43 // pred_fallthru
          _
        %s346 = sand.u32 %s29, 1
        %s347 = scalar_lea.sflag [#allocation7], %s346
        %s348 = sand.u32 %s127, 1
        %s349 = smul.addr %s348, 16
        %s350 = scalar_lea.vmem [#allocation8], %s349
        // Predicated region
        $region53: #{tpu_custom_call.1} parent=43 // pred_check
          %p351 = pneg %p140
        $region54: #{tpu_custom_call.1} parent=43 // pred_check_branch
          %353 = sbr.rel (%p351) target = $region56
        $region55: #{tpu_custom_call.1} parent=43 // pred_region
          %354 = dma.done %s347, 256
        $region56: #{tpu_custom_call.1} parent=43 // pred_fallthru
          _
        %s355 = sand.u32 %s153, 1
        %s356 = scalar_lea.sflag [#allocation10], %s355
        %s357 = sand.u32 %s153, 1
        %s358 = scalar_lea.vmem [#allocation9], %s357
        // Predicated region
        $region57: #{tpu_custom_call.1} parent=43 // pred_check
          %p359 = pneg %p166
        $region58: #{tpu_custom_call.1} parent=43 // pred_check_branch
          %361 = sbr.rel (%p359) target = $region60
        $region59: #{tpu_custom_call.1} parent=43 // pred_region
          %362 = dma.done %s356, 16
        $region60: #{tpu_custom_call.1} parent=43 // pred_fallthru
          _
        %s363 = sand.u32 %s49, 1
        %s364 = scalar_lea.sflag [#allocation4], %s363
        %s365 = sand.u32 %s49, 1
        %s366 = smul.addr %s365, 16
        %s367 = scalar_lea.vmem [#allocation3], %s366
        %p368 = pneg %p62
        %p369 = pneg %p59
        %s370 = sand.u32 %s29, 1
        %s371 = scalar_lea.sflag [#allocation7], %s370
        %s372 = sand.u32 %s75, 1
        %s373 = smul.addr %s372, 48
        %s374 = scalar_lea.vmem [#allocation6], %s373
        %p375 = pneg %p88
        %p376 = pneg %p85
        %p377 = scmp.lt.s32.totalorder %s34, 1
        %s378 = scalar_select %p377, %s34, 1
        %s379 = scalar_lea.vmem %s2, %s378
        %p380 = pneg %p114
        %p381 = pneg %p111
        %s382 = sand.u32 %s29, 1
        %s383 = scalar_lea.sflag [#allocation7], %s382
        %s384 = sand.u32 %s127, 1
        %s385 = smul.addr %s384, 16
        %s386 = scalar_lea.vmem [#allocation8], %s385
        %p387 = pneg %p140
        %p388 = pneg %p137
        %s389 = sand.u32 %s153, 1
        %s390 = scalar_lea.sflag [#allocation10], %s389
        %s391 = sand.u32 %s153, 1
        %s392 = scalar_lea.vmem [#allocation9], %s391
        %p393 = pneg %p166
        %p394 = pneg %p163
        %p395 = pneg %p187
        %p396 = pneg %p184
        %p397 = pneg %p213
        %p398 = pneg %p210
        %s399 = sand.u32 %s200, 1
        %s400 = scalar_lea.sflag [#allocation5], %s399
        %s401 = sand.u32 %s200, 1
        %s402 = smul.addr %s401, 16
        %s403 = scalar_lea.vmem [#allocation11], %s402
        %p404 = scmp.lt.s32.totalorder %s34, 1
        %s405 = scalar_select %p404, %s34, 1
        %s406 = scalar_lea.vmem %s2, %s405
        %s407 = smul.u32 2, %s33
        %p409 = scmp.eq.s32.totalorder %s34, 0
        // Predicated region
        $region61: #{tpu_custom_call.1} parent=43 // pred_check
          %p410 = pneg %p409
        $region62: #{tpu_custom_call.1} parent=43 // pred_check_branch
          %412 = sbr.rel (%p410) target = $region64
        $region63: #{tpu_custom_call.1} parent=43 // pred_region
          %v413 = vld [vmem:[%s332] sm:$0xff]
          %v414 = vld [vmem:[%s332 + $0x8] sm:$0xff]
          %vm415 = vcmask 261120
          %416 = vst.msk [vmem:[#allocation2] sm:$0xff] %vm415, %v413
          %417 = vst.msk [vmem:[#allocation2 + $0x8] sm:$0xff] %vm415, %v414
        $region64: #{tpu_custom_call.1} parent=43 // pred_fallthru
          _
        %v418 = vld [vmem:[#allocation2] sm:$0xff]
        %v419 = vld [vmem:[#allocation2 + $0x8] sm:$0xff]
        %v420 = vlaneseq
        %v421 = vshrl.u32 %v420, 7
        %v422 = vadd.s32 %v421, 8
        %vm423 = vcmp.eq.s32.totalorder %v421, 0
        %vm424 = vcmp.eq.s32.totalorder %v422, 0
        %v425 = vrot.slane %v418, 7
        %v426 = vrot.slane %v419, 7
        %vm427 = vcmp.lt.s32.totalorder %v421, 1
        %v428 = vsel %vm427, %v425, %v426
        %v429 = vsel %vm427, %v426, %v425
        %v430 = vsel %vm423, 1, 0
        %v431 = vsel %vm424, 1, 0
        %vm432 = vcmp.eq.s32.totalorder %v430, 1
        %vm433 = vcmp.eq.s32.totalorder %v431, 1
        %v434 = vsel %vm432, 0.0, %v429
        %v435 = vsel %vm433, 0.0, %v428
        %vm436 = vcmp.eq.s32.totalorder %v421, 15
        %vm437 = vcmp.eq.s32.totalorder %v422, 15
        %v438 = vrot.slane %v418, 1
        %v439 = vrot.slane %v419, 1
        %vm440 = vcmp.lt.s32.totalorder %v421, 7
        %v441 = vsel %vm440, %v438, %v439
        %v442 = vsel %vm440, %v439, %v438
        %v443 = vsel %vm436, 1, 0
        %v444 = vsel %vm437, 1, 0
        %vm445 = vcmp.eq.s32.totalorder %v443, 1
        %vm446 = vcmp.eq.s32.totalorder %v444, 1
        %v447 = vsel %vm445, 0.0, %v441
        %v448 = vsel %vm446, 0.0, %v442
        %v449 = vld [vmem:[%s341] sm:$0xf]
        %v450 = vld [vmem:[%s341 + $0x4] sm:$0xf]
        %v451 = vld [vmem:[%s341 + $0x8] sm:$0xf]
        %v452 = vld [vmem:[%s341 + $0xc] sm:$0xf]
        %v453 = vld [vmem:[%s341 + $0x10] sm:$0xf]
        %v454 = vld [vmem:[%s341 + $0x14] sm:$0xf]
        %v455 = vld [vmem:[%s341 + $0x18] sm:$0xf]
        %v456 = vld [vmem:[%s341 + $0x1c] sm:$0xf]
        %v457 = vld [vmem:[%s341 + $0x20] sm:$0xf]
        %v458 = vld [vmem:[%s341 + $0x24] sm:$0xf]
        %v459 = vld [vmem:[%s341 + $0x28] sm:$0xf]
        %v460 = vld [vmem:[%s341 + $0x2c] sm:$0xf]
        %v461 = vpack.c.bf16 %v435, %v434
        %v462 = vpack.c.bf16 %v419, %v418
        %v467 = vunpack.c.l.b16 %v453
        %v468 = vunpack.c.l.b16 %v454
        %v469 = vunpack.c.l.b16 %v455
        %v470 = vunpack.c.l.b16 %v456
        %v471 = vpack.c.b16 %v468, %v467
        %v472 = vpack.c.b16 %v470, %v469
        %vm475 = vcmask 261120
        %v477 = vsel %vm475, %v462, 0
        %479 = vmatprep.subr.bf16.mxu0 0
        %480 = vmatpush1.bf16.msra.mxu0 %v471
        %481 = vmatprep.subr.bf16.mxu0 0
        %482 = vmatpush1.bf16.msra.mxu0 %v472
        %483 = vmatprep.subr.bf16.mxu0 0
        %484 = vmatpush1.bf16.msra.mxu0 0
        %485 = vmatprep.subr.bf16.mxu0 0
        %486 = vmatpush1.bf16.msra.mxu0 0
        %487 = vmatprep.subr.bf16.mxu0 0
        %488 = vmatpush1.bf16.msra.mxu0 0
        %489 = vmatprep.subr.bf16.mxu0 0
        %490 = vmatpush1.bf16.msra.mxu0 0
        %491 = vmatprep.subr.bf16.mxu0 0
        %492 = vmatpush1.bf16.msra.mxu0 0
        %493 = vmatprep.subr.bf16.mxu0 0
        %494 = vmatpush1.bf16.msra.mxu0 0
        %495 = vmatprep.subr.bf16.mxu0 0
        %496 = vmatpush1.bf16.msra.mxu0 0
        %497 = vmatprep.subr.bf16.mxu0 0
        %498 = vmatpush1.bf16.msra.mxu0 0
        %499 = vmatprep.subr.bf16.mxu0 0
        %500 = vmatpush1.bf16.msra.mxu0 0
        %501 = vmatprep.subr.bf16.mxu0 0
        %502 = vmatpush1.bf16.msra.mxu0 0
        %503 = vmatprep.subr.bf16.mxu0 0
        %504 = vmatpush1.bf16.msra.mxu0 0
        %505 = vmatprep.subr.bf16.mxu0 0
        %506 = vmatpush1.bf16.msra.mxu0 0
        %507 = vmatprep.subr.bf16.mxu0 0
        %508 = vmatpush1.bf16.msra.mxu0 0
        %509 = vmatprep.subr.bf16.mxu0 0
        %510 = vmatpush1.bf16.msra.mxu0 0
        %511 = vmatprep.mubr.bf16.mxu0 0
        %512 = vmatmul.mubr.bf16.gmra.mrb[0].mxu0 %v477
        %v513 = vpop.f32.mrb[0].mxu0
        %v514 = vadd.f32 0.0, %v513
        %v515 = vpop.f32.mrb[0].mxu0
        %v516 = vpop.f32.mrb[0].mxu0
        %v517 = vadd.f32 0.0, %v516
        %v518 = vpop.f32.mrb[0].mxu0
        %519 = vdwg.mxu0
        %v524 = vunpack.c.l.b16 %v449
        %v525 = vunpack.c.l.b16 %v450
        %v526 = vunpack.c.l.b16 %v451
        %v527 = vunpack.c.l.b16 %v452
        %v528 = vpack.c.b16 %v525, %v524
        %v529 = vpack.c.b16 %v527, %v526
        %v533 = vsel %vm475, %v461, 0
        %535 = vmatprep.subr.bf16.mxu0 0
        %536 = vmatpush1.bf16.msra.mxu0 %v528
        %537 = vmatprep.subr.bf16.mxu0 0
        %538 = vmatpush1.bf16.msra.mxu0 %v529
        %539 = vmatprep.subr.bf16.mxu0 0
        %540 = vmatpush1.bf16.msra.mxu0 0
        %541 = vmatprep.subr.bf16.mxu0 0
        %542 = vmatpush1.bf16.msra.mxu0 0
        %543 = vmatprep.subr.bf16.mxu0 0
        %544 = vmatpush1.bf16.msra.mxu0 0
        %545 = vmatprep.subr.bf16.mxu0 0
        %546 = vmatpush1.bf16.msra.mxu0 0
        %547 = vmatprep.subr.bf16.mxu0 0
        %548 = vmatpush1.bf16.msra.mxu0 0
        %549 = vmatprep.subr.bf16.mxu0 0
        %550 = vmatpush1.bf16.msra.mxu0 0
        %551 = vmatprep.subr.bf16.mxu0 0
        %552 = vmatpush1.bf16.msra.mxu0 0
        %553 = vmatprep.subr.bf16.mxu0 0
        %554 = vmatpush1.bf16.msra.mxu0 0
        %555 = vmatprep.subr.bf16.mxu0 0
        %556 = vmatpush1.bf16.msra.mxu0 0
        %557 = vmatprep.subr.bf16.mxu0 0
        %558 = vmatpush1.bf16.msra.mxu0 0
        %559 = vmatprep.subr.bf16.mxu0 0
        %560 = vmatpush1.bf16.msra.mxu0 0
        %561 = vmatprep.subr.bf16.mxu0 0
        %562 = vmatpush1.bf16.msra.mxu0 0
        %563 = vmatprep.subr.bf16.mxu0 0
        %564 = vmatpush1.bf16.msra.mxu0 0
        %565 = vmatprep.subr.bf16.mxu0 0
        %566 = vmatpush1.bf16.msra.mxu0 0
        %567 = vmatprep.mubr.bf16.mxu0 0
        %568 = vmatmul.mubr.bf16.gmra.mrb[0].mxu0 %v533
        %v569 = vpop.f32.mrb[0].mxu0
        %v570 = vadd.f32 %v514, %v569
        %v571 = vpop.f32.mrb[0].mxu0
        %v572 = vpop.f32.mrb[0].mxu0
        %v573 = vadd.f32 %v517, %v572
        %v574 = vpop.f32.mrb[0].mxu0
        %575 = vdwg.mxu0
        %v576 = vpack.c.bf16 %v448, %v447
        %v581 = vunpack.c.l.b16 %v457
        %v582 = vunpack.c.l.b16 %v458
        %v583 = vunpack.c.l.b16 %v459
        %v584 = vunpack.c.l.b16 %v460
        %v585 = vpack.c.b16 %v582, %v581
        %v586 = vpack.c.b16 %v584, %v583
        %v590 = vsel %vm475, %v576, 0
        %592 = vmatprep.subr.bf16.mxu0 0
        %593 = vmatpush1.bf16.msra.mxu0 %v585
        %594 = vmatprep.subr.bf16.mxu0 0
        %595 = vmatpush1.bf16.msra.mxu0 %v586
        %596 = vmatprep.subr.bf16.mxu0 0
        %597 = vmatpush1.bf16.msra.mxu0 0
        %598 = vmatprep.subr.bf16.mxu0 0
        %599 = vmatpush1.bf16.msra.mxu0 0
        %600 = vmatprep.subr.bf16.mxu0 0
        %601 = vmatpush1.bf16.msra.mxu0 0
        %602 = vmatprep.subr.bf16.mxu0 0
        %603 = vmatpush1.bf16.msra.mxu0 0
        %604 = vmatprep.subr.bf16.mxu0 0
        %605 = vmatpush1.bf16.msra.mxu0 0
        %606 = vmatprep.subr.bf16.mxu0 0
        %607 = vmatpush1.bf16.msra.mxu0 0
        %608 = vmatprep.subr.bf16.mxu0 0
        %609 = vmatpush1.bf16.msra.mxu0 0
        %610 = vmatprep.subr.bf16.mxu0 0
        %611 = vmatpush1.bf16.msra.mxu0 0
        %612 = vmatprep.subr.bf16.mxu0 0
        %613 = vmatpush1.bf16.msra.mxu0 0
        %614 = vmatprep.subr.bf16.mxu0 0
        %615 = vmatpush1.bf16.msra.mxu0 0
        %616 = vmatprep.subr.bf16.mxu0 0
        %617 = vmatpush1.bf16.msra.mxu0 0
        %618 = vmatprep.subr.bf16.mxu0 0
        %619 = vmatpush1.bf16.msra.mxu0 0
        %620 = vmatprep.subr.bf16.mxu0 0
        %621 = vmatpush1.bf16.msra.mxu0 0
        %622 = vmatprep.subr.bf16.mxu0 0
        %623 = vmatpush1.bf16.msra.mxu0 0
        %624 = vmatprep.mubr.bf16.mxu0 0
        %625 = vmatmul.mubr.bf16.gmra.mrb[0].mxu0 %v590
        %v626 = vpop.f32.mrb[0].mxu0
        %v627 = vadd.f32 0.0, %v626
        %v628 = vpop.f32.mrb[0].mxu0
        %v629 = vpop.f32.mrb[0].mxu0
        %v630 = vadd.f32 0.0, %v629
        %v631 = vpop.f32.mrb[0].mxu0
        %632 = vdwg.mxu0
        %v633 = vadd.f32 %v570, %v627
        %v634 = vadd.f32 %v573, %v630
        %v635 = vld [vmem:[%s406] sm:$0x1]
        %v637 = vlaneseq
        %v638 = vshrl.u32 %v637, 7
        %v639 = vsub.s32 0, %v638
        %v640 = vrot.slane %v635, %v639
        %v642 = vadd.f32 %v633, %v640
        %v643 = vadd.f32 %v634, %v640
        %646 = vrot.lane.b32.xlu0 %v642, 120
        %v647 = vpop.permute.xlu0 %646
        %648 = vrot.lane.b32.xlu0 %v643, 120
        %v649 = vpop.permute.xlu0 %648
        %652 = vrot.lane.b32.xlu0 %v642, 112
        %v653 = vpop.permute.xlu0 %652
        %654 = vrot.lane.b32.xlu0 %v643, 112
        %v655 = vpop.permute.xlu0 %654
        %658 = vrot.lane.b32.xlu0 %v642, 104
        %v659 = vpop.permute.xlu0 %658
        %660 = vrot.lane.b32.xlu0 %v643, 104
        %v661 = vpop.permute.xlu0 %660
        %664 = vrot.lane.b32.xlu0 %v642, 96
        %v665 = vpop.permute.xlu0 %664
        %666 = vrot.lane.b32.xlu0 %v643, 96
        %v667 = vpop.permute.xlu0 %666
        %670 = vrot.lane.b32.xlu0 %v642, 88
        %v671 = vpop.permute.xlu0 %670
        %672 = vrot.lane.b32.xlu0 %v643, 88
        %v673 = vpop.permute.xlu0 %672
        %676 = vrot.lane.b32.xlu0 %v642, 80
        %v677 = vpop.permute.xlu0 %676
        %678 = vrot.lane.b32.xlu0 %v643, 80
        %v679 = vpop.permute.xlu0 %678
        %682 = vrot.lane.b32.xlu0 %v642, 72
        %v683 = vpop.permute.xlu0 %682
        %684 = vrot.lane.b32.xlu0 %v643, 72
        %v685 = vpop.permute.xlu0 %684
        %688 = vrot.lane.b32.xlu0 %v642, 64
        %v689 = vpop.permute.xlu0 %688
        %690 = vrot.lane.b32.xlu0 %v643, 64
        %v691 = vpop.permute.xlu0 %690
        %694 = vrot.lane.b32.xlu0 %v642, 56
        %v695 = vpop.permute.xlu0 %694
        %696 = vrot.lane.b32.xlu0 %v643, 56
        %v697 = vpop.permute.xlu0 %696
        %700 = vrot.lane.b32.xlu0 %v642, 48
        %v701 = vpop.permute.xlu0 %700
        %702 = vrot.lane.b32.xlu0 %v643, 48
        %v703 = vpop.permute.xlu0 %702
        %706 = vrot.lane.b32.xlu0 %v642, 40
        %v707 = vpop.permute.xlu0 %706
        %708 = vrot.lane.b32.xlu0 %v643, 40
        %v709 = vpop.permute.xlu0 %708
        %v712 = vcombine.low %v642, %v653
        %v713 = vcombine.high %v642, %v653
        %v715 = vunpack.c.l.s4 1983009808
        %v716 = vunpack.c.0.s8 %v715
        %v717 = vlaneseq
        %v718 = vshrl.u32 %v717, 7
        %v719 = vsub.s32 %v716, %v718
        %v720 = vrot.slane %v712, %v719
        %v722 = vunpack.c.l.s4 1983009808
        %v723 = vunpack.c.0.s8 %v722
        %v724 = vlaneseq
        %v725 = vshrl.u32 %v724, 7
        %v726 = vsub.s32 %v723, %v725
        %v727 = vrot.slane %v713, %v726
        %v728 = vcombine.low %v647, %v659
        %v729 = vcombine.high %v647, %v659
        %v731 = vunpack.c.l.s4 1983009808
        %v732 = vunpack.c.0.s8 %v731
        %v733 = vlaneseq
        %v734 = vshrl.u32 %v733, 7
        %v735 = vsub.s32 %v732, %v734
        %v736 = vrot.slane %v728, %v735
        %v738 = vunpack.c.l.s4 1983009808
        %v739 = vunpack.c.0.s8 %v738
        %v740 = vlaneseq
        %v741 = vshrl.u32 %v740, 7
        %v742 = vsub.s32 %v739, %v741
        %v743 = vrot.slane %v729, %v742
        %v744 = vcombine.low %v665, %v677
        %v745 = vcombine.high %v665, %v677
        %v747 = vunpack.c.l.s4 1983009808
        %v748 = vunpack.c.0.s8 %v747
        %v749 = vlaneseq
        %v750 = vshrl.u32 %v749, 7
        %v751 = vsub.s32 %v748, %v750
        %v752 = vrot.slane %v744, %v751
        %v754 = vunpack.c.l.s4 1983009808
        %v755 = vunpack.c.0.s8 %v754
        %v756 = vlaneseq
        %v757 = vshrl.u32 %v756, 7
        %v758 = vsub.s32 %v755, %v757
        %v759 = vrot.slane %v745, %v758
        %v760 = vcombine.low %v671, %v683
        %v761 = vcombine.high %v671, %v683
        %v763 = vunpack.c.l.s4 1983009808
        %v764 = vunpack.c.0.s8 %v763
        %v765 = vlaneseq
        %v766 = vshrl.u32 %v765, 7
        %v767 = vsub.s32 %v764, %v766
        %v768 = vrot.slane %v760, %v767
        %v770 = vunpack.c.l.s4 1983009808
        %v771 = vunpack.c.0.s8 %v770
        %v772 = vlaneseq
        %v773 = vshrl.u32 %v772, 7
        %v774 = vsub.s32 %v771, %v773
        %v775 = vrot.slane %v761, %v774
        %v776 = vcombine.low %v720, %v736
        %v777 = vcombine.high %v720, %v736
        %v779 = vunpack.c.l.s4 1934713408
        %v780 = vunpack.c.0.s8 %v779
        %v781 = vlaneseq
        %v782 = vshrl.u32 %v781, 7
        %v783 = vsub.s32 %v780, %v782
        %v784 = vrot.slane %v776, %v783
        %v786 = vunpack.c.l.s4 1934713408
        %v787 = vunpack.c.0.s8 %v786
        %v788 = vlaneseq
        %v789 = vshrl.u32 %v788, 7
        %v790 = vsub.s32 %v787, %v789
        %v791 = vrot.slane %v777, %v790
        %v792 = vcombine.low %v727, %v743
        %v793 = vcombine.high %v727, %v743
        %v795 = vunpack.c.l.s4 1934713408
        %v796 = vunpack.c.0.s8 %v795
        %v797 = vlaneseq
        %v798 = vshrl.u32 %v797, 7
        %v799 = vsub.s32 %v796, %v798
        %v800 = vrot.slane %v792, %v799
        %v802 = vunpack.c.l.s4 1934713408
        %v803 = vunpack.c.0.s8 %v802
        %v804 = vlaneseq
        %v805 = vshrl.u32 %v804, 7
        %v806 = vsub.s32 %v803, %v805
        %v807 = vrot.slane %v793, %v806
        %v808 = vcombine.low %v752, %v768
        %v809 = vcombine.high %v752, %v768
        %v811 = vunpack.c.l.s4 1934713408
        %v812 = vunpack.c.0.s8 %v811
        %v813 = vlaneseq
        %v814 = vshrl.u32 %v813, 7
        %v815 = vsub.s32 %v812, %v814
        %v816 = vrot.slane %v808, %v815
        %v818 = vunpack.c.l.s4 1934713408
        %v819 = vunpack.c.0.s8 %v818
        %v820 = vlaneseq
        %v821 = vshrl.u32 %v820, 7
        %v822 = vsub.s32 %v819, %v821
        %v823 = vrot.slane %v809, %v822
        %v824 = vcombine.low %v759, %v775
        %v825 = vcombine.high %v759, %v775
        %v827 = vunpack.c.l.s4 1934713408
        %v828 = vunpack.c.0.s8 %v827
        %v829 = vlaneseq
        %v830 = vshrl.u32 %v829, 7
        %v831 = vsub.s32 %v828, %v830
        %v832 = vrot.slane %v824, %v831
        %v834 = vunpack.c.l.s4 1934713408
        %v835 = vunpack.c.0.s8 %v834
        %v836 = vlaneseq
        %v837 = vshrl.u32 %v836, 7
        %v838 = vsub.s32 %v835, %v837
        %v839 = vrot.slane %v825, %v838
        %v840 = vcombine.low %v784, %v816
        %v841 = vcombine.high %v784, %v816
        %v842 = vcombine.low %v791, %v823
        %v843 = vcombine.high %v791, %v823
        %v844 = vcombine.low %v800, %v832
        %v845 = vcombine.high %v800, %v832
        %v846 = vcombine.low %v807, %v839
        %v847 = vcombine.high %v807, %v839
        %v848 = vcombine.low %v689, %v701
        %v849 = vcombine.high %v689, %v701
        %v851 = vunpack.c.l.s4 1983009808
        %v852 = vunpack.c.0.s8 %v851
        %v853 = vlaneseq
        %v854 = vshrl.u32 %v853, 7
        %v855 = vsub.s32 %v852, %v854
        %v856 = vrot.slane %v848, %v855
        %v858 = vunpack.c.l.s4 1983009808
        %v859 = vunpack.c.0.s8 %v858
        %v860 = vlaneseq
        %v861 = vshrl.u32 %v860, 7
        %v862 = vsub.s32 %v859, %v861
        %v863 = vrot.slane %v849, %v862
        %v864 = vcombine.low %v695, %v707
        %v865 = vcombine.high %v695, %v707
        %v867 = vunpack.c.l.s4 1983009808
        %v868 = vunpack.c.0.s8 %v867
        %v869 = vlaneseq
        %v870 = vshrl.u32 %v869, 7
        %v871 = vsub.s32 %v868, %v870
        %v872 = vrot.slane %v864, %v871
        %v874 = vunpack.c.l.s4 1983009808
        %v875 = vunpack.c.0.s8 %v874
        %v876 = vlaneseq
        %v877 = vshrl.u32 %v876, 7
        %v878 = vsub.s32 %v875, %v877
        %v879 = vrot.slane %v865, %v878
        %v880 = vcombine.low %v856, %v872
        %v881 = vcombine.high %v856, %v872
        %v883 = vunpack.c.l.s4 1934713408
        %v884 = vunpack.c.0.s8 %v883
        %v885 = vlaneseq
        %v886 = vshrl.u32 %v885, 7
        %v887 = vsub.s32 %v884, %v886
        %v888 = vrot.slane %v880, %v887
        %v890 = vunpack.c.l.s4 1934713408
        %v891 = vunpack.c.0.s8 %v890
        %v892 = vlaneseq
        %v893 = vshrl.u32 %v892, 7
        %v894 = vsub.s32 %v891, %v893
        %v895 = vrot.slane %v881, %v894
        %v896 = vcombine.low %v863, %v879
        %v897 = vcombine.high %v863, %v879
        %v899 = vunpack.c.l.s4 1934713408
        %v900 = vunpack.c.0.s8 %v899
        %v901 = vlaneseq
        %v902 = vshrl.u32 %v901, 7
        %v903 = vsub.s32 %v900, %v902
        %v904 = vrot.slane %v896, %v903
        %v906 = vunpack.c.l.s4 1934713408
        %v907 = vunpack.c.0.s8 %v906
        %v908 = vlaneseq
        %v909 = vshrl.u32 %v908, 7
        %v910 = vsub.s32 %v907, %v909
        %v911 = vrot.slane %v897, %v910
        %v912 = vcombine.high %v888, 0.0
        %v913 = vcombine.high %v895, 0.0
        %v914 = vcombine.high %v904, 0.0
        %v915 = vcombine.high %v911, 0.0
        %v916 = vcombine.low %v643, %v655
        %v917 = vcombine.high %v643, %v655
        %v919 = vunpack.c.l.s4 1983009808
        %v920 = vunpack.c.0.s8 %v919
        %v921 = vlaneseq
        %v922 = vshrl.u32 %v921, 7
        %v923 = vsub.s32 %v920, %v922
        %v924 = vrot.slane %v916, %v923
        %v926 = vunpack.c.l.s4 1983009808
        %v927 = vunpack.c.0.s8 %v926
        %v928 = vlaneseq
        %v929 = vshrl.u32 %v928, 7
        %v930 = vsub.s32 %v927, %v929
        %v931 = vrot.slane %v917, %v930
        %v932 = vcombine.low %v649, %v661
        %v933 = vcombine.high %v649, %v661
        %v935 = vunpack.c.l.s4 1983009808
        %v936 = vunpack.c.0.s8 %v935
        %v937 = vlaneseq
        %v938 = vshrl.u32 %v937, 7
        %v939 = vsub.s32 %v936, %v938
        %v940 = vrot.slane %v932, %v939
        %v942 = vunpack.c.l.s4 1983009808
        %v943 = vunpack.c.0.s8 %v942
        %v944 = vlaneseq
        %v945 = vshrl.u32 %v944, 7
        %v946 = vsub.s32 %v943, %v945
        %v947 = vrot.slane %v933, %v946
        %v948 = vcombine.low %v667, %v679
        %v949 = vcombine.high %v667, %v679
        %v951 = vunpack.c.l.s4 1983009808
        %v952 = vunpack.c.0.s8 %v951
        %v953 = vlaneseq
        %v954 = vshrl.u32 %v953, 7
        %v955 = vsub.s32 %v952, %v954
        %v956 = vrot.slane %v948, %v955
        %v958 = vunpack.c.l.s4 1983009808
        %v959 = vunpack.c.0.s8 %v958
        %v960 = vlaneseq
        %v961 = vshrl.u32 %v960, 7
        %v962 = vsub.s32 %v959, %v961
        %v963 = vrot.slane %v949, %v962
        %v964 = vcombine.low %v673, %v685
        %v965 = vcombine.high %v673, %v685
        %v967 = vunpack.c.l.s4 1983009808
        %v968 = vunpack.c.0.s8 %v967
        %v969 = vlaneseq
        %v970 = vshrl.u32 %v969, 7
        %v971 = vsub.s32 %v968, %v970
        %v972 = vrot.slane %v964, %v971
        %v974 = vunpack.c.l.s4 1983009808
        %v975 = vunpack.c.0.s8 %v974
        %v976 = vlaneseq
        %v977 = vshrl.u32 %v976, 7
        %v978 = vsub.s32 %v975, %v977
        %v979 = vrot.slane %v965, %v978
        %v980 = vcombine.low %v924, %v940
        %v981 = vcombine.high %v924, %v940
        %v983 = vunpack.c.l.s4 1934713408
        %v984 = vunpack.c.0.s8 %v983
        %v985 = vlaneseq
        %v986 = vshrl.u32 %v985, 7
        %v987 = vsub.s32 %v984, %v986
        %v988 = vrot.slane %v980, %v987
        %v990 = vunpack.c.l.s4 1934713408
        %v991 = vunpack.c.0.s8 %v990
        %v992 = vlaneseq
        %v993 = vshrl.u32 %v992, 7
        %v994 = vsub.s32 %v991, %v993
        %v995 = vrot.slane %v981, %v994
        %v996 = vcombine.low %v931, %v947
        %v997 = vcombine.high %v931, %v947
        %v999 = vunpack.c.l.s4 1934713408
        %v1000 = vunpack.c.0.s8 %v999
        %v1001 = vlaneseq
        %v1002 = vshrl.u32 %v1001, 7
        %v1003 = vsub.s32 %v1000, %v1002
        %v1004 = vrot.slane %v996, %v1003
        %v1006 = vunpack.c.l.s4 1934713408
        %v1007 = vunpack.c.0.s8 %v1006
        %v1008 = vlaneseq
        %v1009 = vshrl.u32 %v1008, 7
        %v1010 = vsub.s32 %v1007, %v1009
        %v1011 = vrot.slane %v997, %v1010
        %v1012 = vcombine.low %v956, %v972
        %v1013 = vcombine.high %v956, %v972
        %v1015 = vunpack.c.l.s4 1934713408
        %v1016 = vunpack.c.0.s8 %v1015
        %v1017 = vlaneseq
        %v1018 = vshrl.u32 %v1017, 7
        %v1019 = vsub.s32 %v1016, %v1018
        %v1020 = vrot.slane %v1012, %v1019
        %v1022 = vunpack.c.l.s4 1934713408
        %v1023 = vunpack.c.0.s8 %v1022
        %v1024 = vlaneseq
        %v1025 = vshrl.u32 %v1024, 7
        %v1026 = vsub.s32 %v1023, %v1025
        %v1027 = vrot.slane %v1013, %v1026
        %v1028 = vcombine.low %v963, %v979
        %v1029 = vcombine.high %v963, %v979
        %v1031 = vunpack.c.l.s4 1934713408
        %v1032 = vunpack.c.0.s8 %v1031
        %v1033 = vlaneseq
        %v1034 = vshrl.u32 %v1033, 7
        %v1035 = vsub.s32 %v1032, %v1034
        %v1036 = vrot.slane %v1028, %v1035
        %v1038 = vunpack.c.l.s4 1934713408
        %v1039 = vunpack.c.0.s8 %v1038
        %v1040 = vlaneseq
        %v1041 = vshrl.u32 %v1040, 7
        %v1042 = vsub.s32 %v1039, %v1041
        %v1043 = vrot.slane %v1029, %v1042
        %v1044 = vcombine.low %v988, %v1020
        %v1045 = vcombine.high %v988, %v1020
        %v1046 = vcombine.low %v995, %v1027
        %v1047 = vcombine.high %v995, %v1027
        %v1048 = vcombine.low %v1004, %v1036
        %v1049 = vcombine.high %v1004, %v1036
        %v1050 = vcombine.low %v1011, %v1043
        %v1051 = vcombine.high %v1011, %v1043
        %v1052 = vcombine.low %v691, %v703
        %v1053 = vcombine.high %v691, %v703
        %v1055 = vunpack.c.l.s4 1983009808
        %v1056 = vunpack.c.0.s8 %v1055
        %v1057 = vlaneseq
        %v1058 = vshrl.u32 %v1057, 7
        %v1059 = vsub.s32 %v1056, %v1058
        %v1060 = vrot.slane %v1052, %v1059
        %v1062 = vunpack.c.l.s4 1983009808
        %v1063 = vunpack.c.0.s8 %v1062
        %v1064 = vlaneseq
        %v1065 = vshrl.u32 %v1064, 7
        %v1066 = vsub.s32 %v1063, %v1065
        %v1067 = vrot.slane %v1053, %v1066
        %v1068 = vcombine.low %v697, %v709
        %v1069 = vcombine.high %v697, %v709
        %v1071 = vunpack.c.l.s4 1983009808
        %v1072 = vunpack.c.0.s8 %v1071
        %v1073 = vlaneseq
        %v1074 = vshrl.u32 %v1073, 7
        %v1075 = vsub.s32 %v1072, %v1074
        %v1076 = vrot.slane %v1068, %v1075
        %v1078 = vunpack.c.l.s4 1983009808
        %v1079 = vunpack.c.0.s8 %v1078
        %v1080 = vlaneseq
        %v1081 = vshrl.u32 %v1080, 7
        %v1082 = vsub.s32 %v1079, %v1081
        %v1083 = vrot.slane %v1069, %v1082
        %v1084 = vcombine.low %v1060, %v1076
        %v1085 = vcombine.high %v1060, %v1076
        %v1087 = vunpack.c.l.s4 1934713408
        %v1088 = vunpack.c.0.s8 %v1087
        %v1089 = vlaneseq
        %v1090 = vshrl.u32 %v1089, 7
        %v1091 = vsub.s32 %v1088, %v1090
        %v1092 = vrot.slane %v1084, %v1091
        %v1094 = vunpack.c.l.s4 1934713408
        %v1095 = vunpack.c.0.s8 %v1094
        %v1096 = vlaneseq
        %v1097 = vshrl.u32 %v1096, 7
        %v1098 = vsub.s32 %v1095, %v1097
        %v1099 = vrot.slane %v1085, %v1098
        %v1100 = vcombine.low %v1067, %v1083
        %v1101 = vcombine.high %v1067, %v1083
        %v1103 = vunpack.c.l.s4 1934713408
        %v1104 = vunpack.c.0.s8 %v1103
        %v1105 = vlaneseq
        %v1106 = vshrl.u32 %v1105, 7
        %v1107 = vsub.s32 %v1104, %v1106
        %v1108 = vrot.slane %v1100, %v1107
        %v1110 = vunpack.c.l.s4 1934713408
        %v1111 = vunpack.c.0.s8 %v1110
        %v1112 = vlaneseq
        %v1113 = vshrl.u32 %v1112, 7
        %v1114 = vsub.s32 %v1111, %v1113
        %v1115 = vrot.slane %v1101, %v1114
        %v1116 = vcombine.high %v1092, 0.0
        %v1117 = vcombine.high %v1099, 0.0
        %v1118 = vcombine.high %v1108, 0.0
        %v1119 = vcombine.high %v1115, 0.0
        %v1120 = vcombine.low %v840, %v842
        %v1121 = vcombine.high %v840, %v842
        %v1123 = vunpack.c.l.s4 1983009808
        %v1124 = vunpack.c.0.s8 %v1123
        %v1125 = vlaneseq
        %v1126 = vshrl.u32 %v1125, 7
        %v1127 = vsub.s32 %v1124, %v1126
        %v1128 = vrot.slane %v1120, %v1127
        %v1130 = vunpack.c.l.s4 1983009808
        %v1131 = vunpack.c.0.s8 %v1130
        %v1132 = vlaneseq
        %v1133 = vshrl.u32 %v1132, 7
        %v1134 = vsub.s32 %v1131, %v1133
        %v1135 = vrot.slane %v1121, %v1134
        %v1136 = vcombine.low %v841, %v843
        %v1137 = vcombine.high %v841, %v843
        %v1139 = vunpack.c.l.s4 1983009808
        %v1140 = vunpack.c.0.s8 %v1139
        %v1141 = vlaneseq
        %v1142 = vshrl.u32 %v1141, 7
        %v1143 = vsub.s32 %v1140, %v1142
        %v1144 = vrot.slane %v1136, %v1143
        %v1146 = vunpack.c.l.s4 1983009808
        %v1147 = vunpack.c.0.s8 %v1146
        %v1148 = vlaneseq
        %v1149 = vshrl.u32 %v1148, 7
        %v1150 = vsub.s32 %v1147, %v1149
        %v1151 = vrot.slane %v1137, %v1150
        %v1152 = vcombine.low %v844, %v846
        %v1153 = vcombine.high %v844, %v846
        %v1155 = vunpack.c.l.s4 1983009808
        %v1156 = vunpack.c.0.s8 %v1155
        %v1157 = vlaneseq
        %v1158 = vshrl.u32 %v1157, 7
        %v1159 = vsub.s32 %v1156, %v1158
        %v1160 = vrot.slane %v1152, %v1159
        %v1162 = vunpack.c.l.s4 1983009808
        %v1163 = vunpack.c.0.s8 %v1162
        %v1164 = vlaneseq
        %v1165 = vshrl.u32 %v1164, 7
        %v1166 = vsub.s32 %v1163, %v1165
        %v1167 = vrot.slane %v1153, %v1166
        %v1168 = vcombine.low %v845, %v847
        %v1169 = vcombine.high %v845, %v847
        %v1171 = vunpack.c.l.s4 1983009808
        %v1172 = vunpack.c.0.s8 %v1171
        %v1173 = vlaneseq
        %v1174 = vshrl.u32 %v1173, 7
        %v1175 = vsub.s32 %v1172, %v1174
        %v1176 = vrot.slane %v1168, %v1175
        %v1178 = vunpack.c.l.s4 1983009808
        %v1179 = vunpack.c.0.s8 %v1178
        %v1180 = vlaneseq
        %v1181 = vshrl.u32 %v1180, 7
        %v1182 = vsub.s32 %v1179, %v1181
        %v1183 = vrot.slane %v1169, %v1182
        %v1184 = vcombine.low %v1128, %v1144
        %v1185 = vcombine.high %v1128, %v1144
        %v1187 = vunpack.c.l.s4 1934713408
        %v1188 = vunpack.c.0.s8 %v1187
        %v1189 = vlaneseq
        %v1190 = vshrl.u32 %v1189, 7
        %v1191 = vsub.s32 %v1188, %v1190
        %v1192 = vrot.slane %v1184, %v1191
        %v1194 = vunpack.c.l.s4 1934713408
        %v1195 = vunpack.c.0.s8 %v1194
        %v1196 = vlaneseq
        %v1197 = vshrl.u32 %v1196, 7
        %v1198 = vsub.s32 %v1195, %v1197
        %v1199 = vrot.slane %v1185, %v1198
        %v1200 = vcombine.low %v1135, %v1151
        %v1201 = vcombine.high %v1135, %v1151
        %v1203 = vunpack.c.l.s4 1934713408
        %v1204 = vunpack.c.0.s8 %v1203
        %v1205 = vlaneseq
        %v1206 = vshrl.u32 %v1205, 7
        %v1207 = vsub.s32 %v1204, %v1206
        %v1208 = vrot.slane %v1200, %v1207
        %v1210 = vunpack.c.l.s4 1934713408
        %v1211 = vunpack.c.0.s8 %v1210
        %v1212 = vlaneseq
        %v1213 = vshrl.u32 %v1212, 7
        %v1214 = vsub.s32 %v1211, %v1213
        %v1215 = vrot.slane %v1201, %v1214
        %v1216 = vcombine.low %v1160, %v1176
        %v1217 = vcombine.high %v1160, %v1176
        %v1219 = vunpack.c.l.s4 1934713408
        %v1220 = vunpack.c.0.s8 %v1219
        %v1221 = vlaneseq
        %v1222 = vshrl.u32 %v1221, 7
        %v1223 = vsub.s32 %v1220, %v1222
        %v1224 = vrot.slane %v1216, %v1223
        %v1226 = vunpack.c.l.s4 1934713408
        %v1227 = vunpack.c.0.s8 %v1226
        %v1228 = vlaneseq
        %v1229 = vshrl.u32 %v1228, 7
        %v1230 = vsub.s32 %v1227, %v1229
        %v1231 = vrot.slane %v1217, %v1230
        %v1232 = vcombine.low %v1167, %v1183
        %v1233 = vcombine.high %v1167, %v1183
        %v1235 = vunpack.c.l.s4 1934713408
        %v1236 = vunpack.c.0.s8 %v1235
        %v1237 = vlaneseq
        %v1238 = vshrl.u32 %v1237, 7
        %v1239 = vsub.s32 %v1236, %v1238
        %v1240 = vrot.slane %v1232, %v1239
        %v1242 = vunpack.c.l.s4 1934713408
        %v1243 = vunpack.c.0.s8 %v1242
        %v1244 = vlaneseq
        %v1245 = vshrl.u32 %v1244, 7
        %v1246 = vsub.s32 %v1243, %v1245
        %v1247 = vrot.slane %v1233, %v1246
        %v1248 = vcombine.low %v1192, %v1224
        %v1249 = vcombine.high %v1192, %v1224
        %v1250 = vcombine.low %v1199, %v1231
        %v1251 = vcombine.high %v1199, %v1231
        %v1252 = vcombine.low %v1208, %v1240
        %v1253 = vcombine.high %v1208, %v1240
        %v1254 = vcombine.low %v1215, %v1247
        %v1255 = vcombine.high %v1215, %v1247
        %v1256 = vcombine.low %v1044, %v1046
        %v1257 = vcombine.high %v1044, %v1046
        %v1259 = vunpack.c.l.s4 1983009808
        %v1260 = vunpack.c.0.s8 %v1259
        %v1261 = vlaneseq
        %v1262 = vshrl.u32 %v1261, 7
        %v1263 = vsub.s32 %v1260, %v1262
        %v1264 = vrot.slane %v1256, %v1263
        %v1266 = vunpack.c.l.s4 1983009808
        %v1267 = vunpack.c.0.s8 %v1266
        %v1268 = vlaneseq
        %v1269 = vshrl.u32 %v1268, 7
        %v1270 = vsub.s32 %v1267, %v1269
        %v1271 = vrot.slane %v1257, %v1270
        %v1272 = vcombine.low %v1045, %v1047
        %v1273 = vcombine.high %v1045, %v1047
        %v1275 = vunpack.c.l.s4 1983009808
        %v1276 = vunpack.c.0.s8 %v1275
        %v1277 = vlaneseq
        %v1278 = vshrl.u32 %v1277, 7
        %v1279 = vsub.s32 %v1276, %v1278
        %v1280 = vrot.slane %v1272, %v1279
        %v1282 = vunpack.c.l.s4 1983009808
        %v1283 = vunpack.c.0.s8 %v1282
        %v1284 = vlaneseq
        %v1285 = vshrl.u32 %v1284, 7
        %v1286 = vsub.s32 %v1283, %v1285
        %v1287 = vrot.slane %v1273, %v1286
        %v1288 = vcombine.low %v1048, %v1050
        %v1289 = vcombine.high %v1048, %v1050
        %v1291 = vunpack.c.l.s4 1983009808
        %v1292 = vunpack.c.0.s8 %v1291
        %v1293 = vlaneseq
        %v1294 = vshrl.u32 %v1293, 7
        %v1295 = vsub.s32 %v1292, %v1294
        %v1296 = vrot.slane %v1288, %v1295
        %v1298 = vunpack.c.l.s4 1983009808
        %v1299 = vunpack.c.0.s8 %v1298
        %v1300 = vlaneseq
        %v1301 = vshrl.u32 %v1300, 7
        %v1302 = vsub.s32 %v1299, %v1301
        %v1303 = vrot.slane %v1289, %v1302
        %v1304 = vcombine.low %v1049, %v1051
        %v1305 = vcombine.high %v1049, %v1051
        %v1307 = vunpack.c.l.s4 1983009808
        %v1308 = vunpack.c.0.s8 %v1307
        %v1309 = vlaneseq
        %v1310 = vshrl.u32 %v1309, 7
        %v1311 = vsub.s32 %v1308, %v1310
        %v1312 = vrot.slane %v1304, %v1311
        %v1314 = vunpack.c.l.s4 1983009808
        %v1315 = vunpack.c.0.s8 %v1314
        %v1316 = vlaneseq
        %v1317 = vshrl.u32 %v1316, 7
        %v1318 = vsub.s32 %v1315, %v1317
        %v1319 = vrot.slane %v1305, %v1318
        %v1320 = vcombine.low %v1264, %v1280
        %v1321 = vcombine.high %v1264, %v1280
        %v1323 = vunpack.c.l.s4 1934713408
        %v1324 = vunpack.c.0.s8 %v1323
        %v1325 = vlaneseq
        %v1326 = vshrl.u32 %v1325, 7
        %v1327 = vsub.s32 %v1324, %v1326
        %v1328 = vrot.slane %v1320, %v1327
        %v1330 = vunpack.c.l.s4 1934713408
        %v1331 = vunpack.c.0.s8 %v1330
        %v1332 = vlaneseq
        %v1333 = vshrl.u32 %v1332, 7
        %v1334 = vsub.s32 %v1331, %v1333
        %v1335 = vrot.slane %v1321, %v1334
        %v1336 = vcombine.low %v1271, %v1287
        %v1337 = vcombine.high %v1271, %v1287
        %v1339 = vunpack.c.l.s4 1934713408
        %v1340 = vunpack.c.0.s8 %v1339
        %v1341 = vlaneseq
        %v1342 = vshrl.u32 %v1341, 7
        %v1343 = vsub.s32 %v1340, %v1342
        %v1344 = vrot.slane %v1336, %v1343
        %v1346 = vunpack.c.l.s4 1934713408
        %v1347 = vunpack.c.0.s8 %v1346
        %v1348 = vlaneseq
        %v1349 = vshrl.u32 %v1348, 7
        %v1350 = vsub.s32 %v1347, %v1349
        %v1351 = vrot.slane %v1337, %v1350
        %v1352 = vcombine.low %v1296, %v1312
        %v1353 = vcombine.high %v1296, %v1312
        %v1355 = vunpack.c.l.s4 1934713408
        %v1356 = vunpack.c.0.s8 %v1355
        %v1357 = vlaneseq
        %v1358 = vshrl.u32 %v1357, 7
        %v1359 = vsub.s32 %v1356, %v1358
        %v1360 = vrot.slane %v1352, %v1359
        %v1362 = vunpack.c.l.s4 1934713408
        %v1363 = vunpack.c.0.s8 %v1362
        %v1364 = vlaneseq
        %v1365 = vshrl.u32 %v1364, 7
        %v1366 = vsub.s32 %v1363, %v1365
        %v1367 = vrot.slane %v1353, %v1366
        %v1368 = vcombine.low %v1303, %v1319
        %v1369 = vcombine.high %v1303, %v1319
        %v1371 = vunpack.c.l.s4 1934713408
        %v1372 = vunpack.c.0.s8 %v1371
        %v1373 = vlaneseq
        %v1374 = vshrl.u32 %v1373, 7
        %v1375 = vsub.s32 %v1372, %v1374
        %v1376 = vrot.slane %v1368, %v1375
        %v1378 = vunpack.c.l.s4 1934713408
        %v1379 = vunpack.c.0.s8 %v1378
        %v1380 = vlaneseq
        %v1381 = vshrl.u32 %v1380, 7
        %v1382 = vsub.s32 %v1379, %v1381
        %v1383 = vrot.slane %v1369, %v1382
        %v1384 = vcombine.low %v1328, %v1360
        %v1385 = vcombine.high %v1328, %v1360
        %v1386 = vcombine.low %v1335, %v1367
        %v1387 = vcombine.high %v1335, %v1367
        %v1388 = vcombine.low %v1344, %v1376
        %v1389 = vcombine.high %v1344, %v1376
        %v1390 = vcombine.low %v1351, %v1383
        %v1391 = vcombine.high %v1351, %v1383
        %v1392 = vcombine.low %v888, %v895
        %v1394 = vunpack.c.l.s4 1983009808
        %v1395 = vunpack.c.0.s8 %v1394
        %v1396 = vlaneseq
        %v1397 = vshrl.u32 %v1396, 7
        %v1398 = vsub.s32 %v1395, %v1397
        %v1399 = vrot.slane %v1392, %v1398
        %v1400 = vcombine.low %v912, %v913
        %v1402 = vunpack.c.l.s4 1983009808
        %v1403 = vunpack.c.0.s8 %v1402
        %v1404 = vlaneseq
        %v1405 = vshrl.u32 %v1404, 7
        %v1406 = vsub.s32 %v1403, %v1405
        %v1407 = vrot.slane %v1400, %v1406
        %v1408 = vcombine.low %v904, %v911
        %v1410 = vunpack.c.l.s4 1983009808
        %v1411 = vunpack.c.0.s8 %v1410
        %v1412 = vlaneseq
        %v1413 = vshrl.u32 %v1412, 7
        %v1414 = vsub.s32 %v1411, %v1413
        %v1415 = vrot.slane %v1408, %v1414
        %v1416 = vcombine.low %v914, %v915
        %v1418 = vunpack.c.l.s4 1983009808
        %v1419 = vunpack.c.0.s8 %v1418
        %v1420 = vlaneseq
        %v1421 = vshrl.u32 %v1420, 7
        %v1422 = vsub.s32 %v1419, %v1421
        %v1423 = vrot.slane %v1416, %v1422
        %v1424 = vcombine.low %v1399, %v1407
        %v1425 = vcombine.high %v1399, %v1407
        %v1427 = vunpack.c.l.s4 1934713408
        %v1428 = vunpack.c.0.s8 %v1427
        %v1429 = vlaneseq
        %v1430 = vshrl.u32 %v1429, 7
        %v1431 = vsub.s32 %v1428, %v1430
        %v1432 = vrot.slane %v1424, %v1431
        %v1434 = vunpack.c.l.s4 1934713408
        %v1435 = vunpack.c.0.s8 %v1434
        %v1436 = vlaneseq
        %v1437 = vshrl.u32 %v1436, 7
        %v1438 = vsub.s32 %v1435, %v1437
        %v1439 = vrot.slane %v1425, %v1438
        %v1440 = vcombine.low %v1415, %v1423
        %v1441 = vcombine.high %v1415, %v1423
        %v1443 = vunpack.c.l.s4 1934713408
        %v1444 = vunpack.c.0.s8 %v1443
        %v1445 = vlaneseq
        %v1446 = vshrl.u32 %v1445, 7
        %v1447 = vsub.s32 %v1444, %v1446
        %v1448 = vrot.slane %v1440, %v1447
        %v1450 = vunpack.c.l.s4 1934713408
        %v1451 = vunpack.c.0.s8 %v1450
        %v1452 = vlaneseq
        %v1453 = vshrl.u32 %v1452, 7
        %v1454 = vsub.s32 %v1451, %v1453
        %v1455 = vrot.slane %v1441, %v1454
        %v1456 = vcombine.low %v1432, %v1448
        %v1457 = vcombine.high %v1432, %v1448
        %v1458 = vcombine.low %v1439, %v1455
        %v1459 = vcombine.high %v1439, %v1455
        %v1460 = vcombine.low %v1092, %v1099
        %v1462 = vunpack.c.l.s4 1983009808
        %v1463 = vunpack.c.0.s8 %v1462
        %v1464 = vlaneseq
        %v1465 = vshrl.u32 %v1464, 7
        %v1466 = vsub.s32 %v1463, %v1465
        %v1467 = vrot.slane %v1460, %v1466
        %v1468 = vcombine.low %v1116, %v1117
        %v1470 = vunpack.c.l.s4 1983009808
        %v1471 = vunpack.c.0.s8 %v1470
        %v1472 = vlaneseq
        %v1473 = vshrl.u32 %v1472, 7
        %v1474 = vsub.s32 %v1471, %v1473
        %v1475 = vrot.slane %v1468, %v1474
        %v1476 = vcombine.low %v1108, %v1115
        %v1478 = vunpack.c.l.s4 1983009808
        %v1479 = vunpack.c.0.s8 %v1478
        %v1480 = vlaneseq
        %v1481 = vshrl.u32 %v1480, 7
        %v1482 = vsub.s32 %v1479, %v1481
        %v1483 = vrot.slane %v1476, %v1482
        %v1484 = vcombine.low %v1118, %v1119
        %v1486 = vunpack.c.l.s4 1983009808
        %v1487 = vunpack.c.0.s8 %v1486
        %v1488 = vlaneseq
        %v1489 = vshrl.u32 %v1488, 7
        %v1490 = vsub.s32 %v1487, %v1489
        %v1491 = vrot.slane %v1484, %v1490
        %v1492 = vcombine.low %v1467, %v1475
        %v1493 = vcombine.high %v1467, %v1475
        %v1495 = vunpack.c.l.s4 1934713408
        %v1496 = vunpack.c.0.s8 %v1495
        %v1497 = vlaneseq
        %v1498 = vshrl.u32 %v1497, 7
        %v1499 = vsub.s32 %v1496, %v1498
        %v1500 = vrot.slane %v1492, %v1499
        %v1502 = vunpack.c.l.s4 1934713408
        %v1503 = vunpack.c.0.s8 %v1502
        %v1504 = vlaneseq
        %v1505 = vshrl.u32 %v1504, 7
        %v1506 = vsub.s32 %v1503, %v1505
        %v1507 = vrot.slane %v1493, %v1506
        %v1508 = vcombine.low %v1483, %v1491
        %v1509 = vcombine.high %v1483, %v1491
        %v1511 = vunpack.c.l.s4 1934713408
        %v1512 = vunpack.c.0.s8 %v1511
        %v1513 = vlaneseq
        %v1514 = vshrl.u32 %v1513, 7
        %v1515 = vsub.s32 %v1512, %v1514
        %v1516 = vrot.slane %v1508, %v1515
        %v1518 = vunpack.c.l.s4 1934713408
        %v1519 = vunpack.c.0.s8 %v1518
        %v1520 = vlaneseq
        %v1521 = vshrl.u32 %v1520, 7
        %v1522 = vsub.s32 %v1519, %v1521
        %v1523 = vrot.slane %v1509, %v1522
        %v1524 = vcombine.low %v1500, %v1516
        %v1525 = vcombine.high %v1500, %v1516
        %v1526 = vcombine.low %v1507, %v1523
        %v1527 = vcombine.high %v1507, %v1523
        %v1528 = vpack.c.bf16 %v1384, %v1248
        %v1529 = vpack.c.bf16 %v1385, %v1249
        %v1530 = vpack.c.bf16 %v1386, %v1250
        %v1531 = vpack.c.bf16 %v1387, %v1251
        %v1532 = vpack.c.bf16 %v1388, %v1252
        %v1533 = vpack.c.bf16 %v1389, %v1253
        %v1534 = vpack.c.bf16 %v1390, %v1254
        %v1535 = vpack.c.bf16 %v1391, %v1255
        %v1536 = vpack.c.bf16 %v1524, %v1456
        %v1537 = vpack.c.bf16 %v1525, %v1457
        %v1538 = vpack.c.bf16 %v1526, %v1458
        %v1539 = vpack.c.bf16 %v1527, %v1459
        %vm1540 = vcmask 64512
        %v1542 = vsel %vm1540, %v1528, 0
        %v1545 = vsel %vm1540, %v1532, 0
        %1547 = vmatprep.subr.bf16.mxu0 0
        %1548 = vmatpush1.bf16.xpose.msra.mxu0 %v1545
        %1549 = vmatprep.subr.bf16.mxu0 0
        %1550 = vmatpush1.bf16.xpose.msra.mxu0 0
        %1551 = vmatprep.subr.bf16.mxu0 0
        %1552 = vmatpush1.bf16.xpose.msra.mxu0 0
        %1553 = vmatprep.subr.bf16.mxu0 0
        %1554 = vmatpush1.bf16.xpose.msra.mxu0 0
        %1555 = vmatprep.subr.bf16.mxu0 0
        %1556 = vmatpush1.bf16.xpose.msra.mxu0 0
        %1557 = vmatprep.subr.bf16.mxu0 0
        %1558 = vmatpush1.bf16.xpose.msra.mxu0 0
        %1559 = vmatprep.subr.bf16.mxu0 0
        %1560 = vmatpush1.bf16.xpose.msra.mxu0 0
        %1561 = vmatprep.subr.bf16.mxu0 0
        %1562 = vmatpush1.bf16.xpose.msra.mxu0 0
        %1563 = vmatprep.subr.bf16.mxu0 0
        %1564 = vmatpush1.bf16.xpose.msra.mxu0 0
        %1565 = vmatprep.subr.bf16.mxu0 0
        %1566 = vmatpush1.bf16.xpose.msra.mxu0 0
        %1567 = vmatprep.subr.bf16.mxu0 0
        %1568 = vmatpush1.bf16.xpose.msra.mxu0 0
        %1569 = vmatprep.subr.bf16.mxu0 0
        %1570 = vmatpush1.bf16.xpose.msra.mxu0 0
        %1571 = vmatprep.subr.bf16.mxu0 0
        %1572 = vmatpush1.bf16.xpose.msra.mxu0 0
        %1573 = vmatprep.subr.bf16.mxu0 0
        %1574 = vmatpush1.bf16.xpose.msra.mxu0 0
        %1575 = vmatprep.subr.bf16.mxu0 0
        %1576 = vmatpush1.bf16.xpose.msra.mxu0 0
        %1577 = vmatprep.subr.bf16.mxu0 0
        %1578 = vmatpush1.bf16.xpose.msra.mxu0 0
        %1579 = vmatprep.mubr.bf16.mxu0 0
        %1580 = vmatmul.mubr.bf16.gmra.mrb[0].mxu0 %v1542
        %v1581 = vpop.f32.mrb[0].mxu0
        %v1582 = vadd.f32 0.0, %v1581
        %v1583 = vpop.f32.mrb[0].mxu0
        %v1584 = vpop.f32.mrb[0].mxu0
        %v1585 = vadd.f32 0.0, %v1584
        %v1586 = vpop.f32.mrb[0].mxu0
        %1587 = vdwg.mxu0
        %v1589 = vsel %vm1540, %v1529, 0
        %v1592 = vsel %vm1540, %v1533, 0
        %1594 = vmatprep.subr.bf16.mxu0 0
        %1595 = vmatpush1.bf16.xpose.msra.mxu0 %v1592
        %1596 = vmatprep.subr.bf16.mxu0 0
        %1597 = vmatpush1.bf16.xpose.msra.mxu0 0
        %1598 = vmatprep.subr.bf16.mxu0 0
        %1599 = vmatpush1.bf16.xpose.msra.mxu0 0
        %1600 = vmatprep.subr.bf16.mxu0 0
        %1601 = vmatpush1.bf16.xpose.msra.mxu0 0
        %1602 = vmatprep.subr.bf16.mxu0 0
        %1603 = vmatpush1.bf16.xpose.msra.mxu0 0
        %1604 = vmatprep.subr.bf16.mxu0 0
        %1605 = vmatpush1.bf16.xpose.msra.mxu0 0
        %1606 = vmatprep.subr.bf16.mxu0 0
        %1607 = vmatpush1.bf16.xpose.msra.mxu0 0
        %1608 = vmatprep.subr.bf16.mxu0 0
        %1609 = vmatpush1.bf16.xpose.msra.mxu0 0
        %1610 = vmatprep.subr.bf16.mxu0 0
        %1611 = vmatpush1.bf16.xpose.msra.mxu0 0
        %1612 = vmatprep.subr.bf16.mxu0 0
        %1613 = vmatpush1.bf16.xpose.msra.mxu0 0
        %1614 = vmatprep.subr.bf16.mxu0 0
        %1615 = vmatpush1.bf16.xpose.msra.mxu0 0
        %1616 = vmatprep.subr.bf16.mxu0 0
        %1617 = vmatpush1.bf16.xpose.msra.mxu0 0
        %1618 = vmatprep.subr.bf16.mxu0 0
        %1619 = vmatpush1.bf16.xpose.msra.mxu0 0
        %1620 = vmatprep.subr.bf16.mxu0 0
        %1621 = vmatpush1.bf16.xpose.msra.mxu0 0
        %1622 = vmatprep.subr.bf16.mxu0 0
        %1623 = vmatpush1.bf16.xpose.msra.mxu0 0
        %1624 = vmatprep.subr.bf16.mxu0 0
        %1625 = vmatpush1.bf16.xpose.msra.mxu0 0
        %1626 = vmatprep.mubr.bf16.mxu0 0
        %1627 = vmatmul.mubr.bf16.gmra.mrb[0].mxu0 %v1589
        %v1628 = vpop.f32.mrb[0].mxu0
        %v1629 = vadd.f32 0.0, %v1628
        %v1630 = vpop.f32.mrb[0].mxu0
        %v1631 = vpop.f32.mrb[0].mxu0
        %v1632 = vadd.f32 0.0, %v1631
        %v1633 = vpop.f32.mrb[0].mxu0
        %1634 = vdwg.mxu0
        %v1636 = vsel %vm1540, %v1530, 0
        %v1639 = vsel %vm1540, %v1534, 0
        %1641 = vmatprep.subr.bf16.mxu0 0
        %1642 = vmatpush1.bf16.xpose.msra.mxu0 %v1639
        %1643 = vmatprep.subr.bf16.mxu0 0
        %1644 = vmatpush1.bf16.xpose.msra.mxu0 0
        %1645 = vmatprep.subr.bf16.mxu0 0
        %1646 = vmatpush1.bf16.xpose.msra.mxu0 0
        %1647 = vmatprep.subr.bf16.mxu0 0
        %1648 = vmatpush1.bf16.xpose.msra.mxu0 0
        %1649 = vmatprep.subr.bf16.mxu0 0
        %1650 = vmatpush1.bf16.xpose.msra.mxu0 0
        %1651 = vmatprep.subr.bf16.mxu0 0
        %1652 = vmatpush1.bf16.xpose.msra.mxu0 0
        %1653 = vmatprep.subr.bf16.mxu0 0
        %1654 = vmatpush1.bf16.xpose.msra.mxu0 0
        %1655 = vmatprep.subr.bf16.mxu0 0
        %1656 = vmatpush1.bf16.xpose.msra.mxu0 0
        %1657 = vmatprep.subr.bf16.mxu0 0
        %1658 = vmatpush1.bf16.xpose.msra.mxu0 0
        %1659 = vmatprep.subr.bf16.mxu0 0
        %1660 = vmatpush1.bf16.xpose.msra.mxu0 0
        %1661 = vmatprep.subr.bf16.mxu0 0
        %1662 = vmatpush1.bf16.xpose.msra.mxu0 0
        %1663 = vmatprep.subr.bf16.mxu0 0
        %1664 = vmatpush1.bf16.xpose.msra.mxu0 0
        %1665 = vmatprep.subr.bf16.mxu0 0
        %1666 = vmatpush1.bf16.xpose.msra.mxu0 0
        %1667 = vmatprep.subr.bf16.mxu0 0
        %1668 = vmatpush1.bf16.xpose.msra.mxu0 0
        %1669 = vmatprep.subr.bf16.mxu0 0
        %1670 = vmatpush1.bf16.xpose.msra.mxu0 0
        %1671 = vmatprep.subr.bf16.mxu0 0
        %1672 = vmatpush1.bf16.xpose.msra.mxu0 0
        %1673 = vmatprep.mubr.bf16.mxu0 0
        %1674 = vmatmul.mubr.bf16.gmra.mrb[0].mxu0 %v1636
        %v1675 = vpop.f32.mrb[0].mxu0
        %v1676 = vadd.f32 0.0, %v1675
        %v1677 = vpop.f32.mrb[0].mxu0
        %v1678 = vpop.f32.mrb[0].mxu0
        %v1679 = vadd.f32 0.0, %v1678
        %v1680 = vpop.f32.mrb[0].mxu0
        %1681 = vdwg.mxu0
        %v1683 = vsel %vm1540, %v1531, 0
        %v1686 = vsel %vm1540, %v1535, 0
        %1688 = vmatprep.subr.bf16.mxu0 0
        %1689 = vmatpush1.bf16.xpose.msra.mxu0 %v1686
        %1690 = vmatprep.subr.bf16.mxu0 0
        %1691 = vmatpush1.bf16.xpose.msra.mxu0 0
        %1692 = vmatprep.subr.bf16.mxu0 0
        %1693 = vmatpush1.bf16.xpose.msra.mxu0 0
        %1694 = vmatprep.subr.bf16.mxu0 0
        %1695 = vmatpush1.bf16.xpose.msra.mxu0 0
        %1696 = vmatprep.subr.bf16.mxu0 0
        %1697 = vmatpush1.bf16.xpose.msra.mxu0 0
        %1698 = vmatprep.subr.bf16.mxu0 0
        %1699 = vmatpush1.bf16.xpose.msra.mxu0 0
        %1700 = vmatprep.subr.bf16.mxu0 0
        %1701 = vmatpush1.bf16.xpose.msra.mxu0 0
        %1702 = vmatprep.subr.bf16.mxu0 0
        %1703 = vmatpush1.bf16.xpose.msra.mxu0 0
        %1704 = vmatprep.subr.bf16.mxu0 0
        %1705 = vmatpush1.bf16.xpose.msra.mxu0 0
        %1706 = vmatprep.subr.bf16.mxu0 0
        %1707 = vmatpush1.bf16.xpose.msra.mxu0 0
        %1708 = vmatprep.subr.bf16.mxu0 0
        %1709 = vmatpush1.bf16.xpose.msra.mxu0 0
        %1710 = vmatprep.subr.bf16.mxu0 0
        %1711 = vmatpush1.bf16.xpose.msra.mxu0 0
        %1712 = vmatprep.subr.bf16.mxu0 0
        %1713 = vmatpush1.bf16.xpose.msra.mxu0 0
        %1714 = vmatprep.subr.bf16.mxu0 0
        %1715 = vmatpush1.bf16.xpose.msra.mxu0 0
        %1716 = vmatprep.subr.bf16.mxu0 0
        %1717 = vmatpush1.bf16.xpose.msra.mxu0 0
        %1718 = vmatprep.subr.bf16.mxu0 0
        %1719 = vmatpush1.bf16.xpose.msra.mxu0 0
        %1720 = vmatprep.mubr.bf16.mxu0 0
        %1721 = vmatmul.mubr.bf16.gmra.mrb[0].mxu0 %v1683
        %v1722 = vpop.f32.mrb[0].mxu0
        %v1723 = vadd.f32 0.0, %v1722
        %v1724 = vpop.f32.mrb[0].mxu0
        %v1725 = vpop.f32.mrb[0].mxu0
        %v1726 = vadd.f32 0.0, %v1725
        %v1727 = vpop.f32.mrb[0].mxu0
        %1728 = vdwg.mxu0
        %vm1729 = vcmask 130048
        %v1730 = vsel %vm1729, %v1582, -inf
        %1731 = vmax.xlane.f32.xlu0 %v1730
        %v1732 = vpop.xlane.xlu0 %1731
        %v1733 = vsel %vm1729, %v1585, -inf
        %1734 = vmax.xlane.f32.xlu0 %v1733
        %v1735 = vpop.xlane.xlu0 %1734
        %v1736 = vsel %vm1729, %v1629, -inf
        %1737 = vmax.xlane.f32.xlu0 %v1736
        %v1738 = vpop.xlane.xlu0 %1737
        %v1739 = vsel %vm1729, %v1632, -inf
        %1740 = vmax.xlane.f32.xlu0 %v1739
        %v1741 = vpop.xlane.xlu0 %1740
        %v1742 = vsel %vm1729, %v1676, -inf
        %1743 = vmax.xlane.f32.xlu0 %v1742
        %v1744 = vpop.xlane.xlu0 %1743
        %v1745 = vsel %vm1729, %v1679, -inf
        %1746 = vmax.xlane.f32.xlu0 %v1745
        %v1747 = vpop.xlane.xlu0 %1746
        %v1748 = vsel %vm1729, %v1723, -inf
        %1749 = vmax.xlane.f32.xlu0 %v1748
        %v1750 = vpop.xlane.xlu0 %1749
        %v1751 = vsel %vm1729, %v1726, -inf
        %1752 = vmax.xlane.f32.xlu0 %v1751
        %v1753 = vpop.xlane.xlu0 %1752
        %v1754 = vsub.f32 %v1582, %v1732
        %v1755 = vsub.f32 %v1585, %v1735
        %v1756 = vsub.f32 %v1629, %v1738
        %v1757 = vsub.f32 %v1632, %v1741
        %v1758 = vsub.f32 %v1676, %v1744
        %v1759 = vsub.f32 %v1679, %v1747
        %v1760 = vsub.f32 %v1723, %v1750
        %v1761 = vsub.f32 %v1726, %v1753
        %v1762 = vmul.f32 %v1754, 1.442695
        %v1763 = vpow.pop %v1762
        %v1764 = vmul.f32 %v1755, 1.442695
        %v1765 = vpow.pop %v1764
        %v1766 = vmul.f32 %v1756, 1.442695
        %v1767 = vpow.pop %v1766
        %v1768 = vmul.f32 %v1757, 1.442695
        %v1769 = vpow.pop %v1768
        %v1770 = vmul.f32 %v1758, 1.442695
        %v1771 = vpow.pop %v1770
        %v1772 = vmul.f32 %v1759, 1.442695
        %v1773 = vpow.pop %v1772
        %v1774 = vmul.f32 %v1760, 1.442695
        %v1775 = vpow.pop %v1774
        %v1776 = vmul.f32 %v1761, 1.442695
        %v1777 = vpow.pop %v1776
        %v1778 = vsel %vm1729, %v1763, 0.0
        %1779 = vadd.xlane.f32.xlu0 %v1778
        %v1780 = vpop.xlane.xlu0 %1779
        %v1781 = vsel %vm1729, %v1765, 0.0
        %1782 = vadd.xlane.f32.xlu0 %v1781
        %v1783 = vpop.xlane.xlu0 %1782
        %v1784 = vsel %vm1729, %v1767, 0.0
        %1785 = vadd.xlane.f32.xlu0 %v1784
        %v1786 = vpop.xlane.xlu0 %1785
        %v1787 = vsel %vm1729, %v1769, 0.0
        %1788 = vadd.xlane.f32.xlu0 %v1787
        %v1789 = vpop.xlane.xlu0 %1788
        %v1790 = vsel %vm1729, %v1771, 0.0
        %1791 = vadd.xlane.f32.xlu0 %v1790
        %v1792 = vpop.xlane.xlu0 %1791
        %v1793 = vsel %vm1729, %v1773, 0.0
        %1794 = vadd.xlane.f32.xlu0 %v1793
        %v1795 = vpop.xlane.xlu0 %1794
        %v1796 = vsel %vm1729, %v1775, 0.0
        %1797 = vadd.xlane.f32.xlu0 %v1796
        %v1798 = vpop.xlane.xlu0 %1797
        %v1799 = vsel %vm1729, %v1777, 0.0
        %1800 = vadd.xlane.f32.xlu0 %v1799
        %v1801 = vpop.xlane.xlu0 %1800
        %v1802 = vrcp.pop %v1780
        %v1803 = vrcp.pop %v1783
        %v1804 = vrcp.pop %v1786
        %v1805 = vrcp.pop %v1789
        %v1806 = vrcp.pop %v1792
        %v1807 = vrcp.pop %v1795
        %v1808 = vrcp.pop %v1798
        %v1809 = vrcp.pop %v1801
        %v1810 = vmul.f32 %v1763, %v1802
        %v1811 = vmul.f32 %v1765, %v1803
        %v1812 = vmul.f32 %v1767, %v1804
        %v1813 = vmul.f32 %v1769, %v1805
        %v1814 = vmul.f32 %v1771, %v1806
        %v1815 = vmul.f32 %v1773, %v1807
        %v1816 = vmul.f32 %v1775, %v1808
        %v1817 = vmul.f32 %v1777, %v1809
        %v1818 = vpack.c.bf16 %v1811, %v1810
        %v1819 = vpack.c.bf16 %v1813, %v1812
        %v1820 = vpack.c.bf16 %v1815, %v1814
        %v1821 = vpack.c.bf16 %v1817, %v1816
        %v1823 = vsel %vm1729, %v1818, 0
        %1825 = vmatprep.subr.bf16.mxu0 0
        %1826 = vmatpush1.bf16.msra.mxu0 %v1536
        %1827 = vmatprep.subr.bf16.mxu0 0
        %1828 = vmatpush1.bf16.msra.mxu0 0
        %1829 = vmatprep.subr.bf16.mxu0 0
        %1830 = vmatpush1.bf16.msra.mxu0 0
        %1831 = vmatprep.subr.bf16.mxu0 0
        %1832 = vmatpush1.bf16.msra.mxu0 0
        %1833 = vmatprep.subr.bf16.mxu0 0
        %1834 = vmatpush1.bf16.msra.mxu0 0
        %1835 = vmatprep.subr.bf16.mxu0 0
        %1836 = vmatpush1.bf16.msra.mxu0 0
        %1837 = vmatprep.subr.bf16.mxu0 0
        %1838 = vmatpush1.bf16.msra.mxu0 0
        %1839 = vmatprep.subr.bf16.mxu0 0
        %1840 = vmatpush1.bf16.msra.mxu0 0
        %1841 = vmatprep.subr.bf16.mxu0 0
        %1842 = vmatpush1.bf16.msra.mxu0 0
        %1843 = vmatprep.subr.bf16.mxu0 0
        %1844 = vmatpush1.bf16.msra.mxu0 0
        %1845 = vmatprep.subr.bf16.mxu0 0
        %1846 = vmatpush1.bf16.msra.mxu0 0
        %1847 = vmatprep.subr.bf16.mxu0 0
        %1848 = vmatpush1.bf16.msra.mxu0 0
        %1849 = vmatprep.subr.bf16.mxu0 0
        %1850 = vmatpush1.bf16.msra.mxu0 0
        %1851 = vmatprep.subr.bf16.mxu0 0
        %1852 = vmatpush1.bf16.msra.mxu0 0
        %1853 = vmatprep.subr.bf16.mxu0 0
        %1854 = vmatpush1.bf16.msra.mxu0 0
        %1855 = vmatprep.subr.bf16.mxu0 0
        %1856 = vmatpush1.bf16.msra.mxu0 0
        %1857 = vmatprep.mubr.bf16.mxu0 0
        %1858 = vmatmul.mubr.bf16.gmra.mrb[0].mxu0 %v1823
        %v1859 = vpop.f32.mrb[0].mxu0
        %v1860 = vadd.f32 0.0, %v1859
        %v1861 = vpop.f32.mrb[0].mxu0
        %v1862 = vpop.f32.mrb[0].mxu0
        %v1863 = vadd.f32 0.0, %v1862
        %v1864 = vpop.f32.mrb[0].mxu0
        %1865 = vdwg.mxu0
        %v1867 = vsel %vm1729, %v1819, 0
        %1869 = vmatprep.subr.bf16.mxu0 0
        %1870 = vmatpush1.bf16.msra.mxu0 %v1537
        %1871 = vmatprep.subr.bf16.mxu0 0
        %1872 = vmatpush1.bf16.msra.mxu0 0
        %1873 = vmatprep.subr.bf16.mxu0 0
        %1874 = vmatpush1.bf16.msra.mxu0 0
        %1875 = vmatprep.subr.bf16.mxu0 0
        %1876 = vmatpush1.bf16.msra.mxu0 0
        %1877 = vmatprep.subr.bf16.mxu0 0
        %1878 = vmatpush1.bf16.msra.mxu0 0
        %1879 = vmatprep.subr.bf16.mxu0 0
        %1880 = vmatpush1.bf16.msra.mxu0 0
        %1881 = vmatprep.subr.bf16.mxu0 0
        %1882 = vmatpush1.bf16.msra.mxu0 0
        %1883 = vmatprep.subr.bf16.mxu0 0
        %1884 = vmatpush1.bf16.msra.mxu0 0
        %1885 = vmatprep.subr.bf16.mxu0 0
        %1886 = vmatpush1.bf16.msra.mxu0 0
        %1887 = vmatprep.subr.bf16.mxu0 0
        %1888 = vmatpush1.bf16.msra.mxu0 0
        %1889 = vmatprep.subr.bf16.mxu0 0
        %1890 = vmatpush1.bf16.msra.mxu0 0
        %1891 = vmatprep.subr.bf16.mxu0 0
        %1892 = vmatpush1.bf16.msra.mxu0 0
        %1893 = vmatprep.subr.bf16.mxu0 0
        %1894 = vmatpush1.bf16.msra.mxu0 0
        %1895 = vmatprep.subr.bf16.mxu0 0
        %1896 = vmatpush1.bf16.msra.mxu0 0
        %1897 = vmatprep.subr.bf16.mxu0 0
        %1898 = vmatpush1.bf16.msra.mxu0 0
        %1899 = vmatprep.subr.bf16.mxu0 0
        %1900 = vmatpush1.bf16.msra.mxu0 0
        %1901 = vmatprep.mubr.bf16.mxu0 0
        %1902 = vmatmul.mubr.bf16.gmra.mrb[0].mxu0 %v1867
        %v1903 = vpop.f32.mrb[0].mxu0
        %v1904 = vadd.f32 0.0, %v1903
        %v1905 = vpop.f32.mrb[0].mxu0
        %v1906 = vpop.f32.mrb[0].mxu0
        %v1907 = vadd.f32 0.0, %v1906
        %v1908 = vpop.f32.mrb[0].mxu0
        %1909 = vdwg.mxu0
        %v1911 = vsel %vm1729, %v1820, 0
        %1913 = vmatprep.subr.bf16.mxu0 0
        %1914 = vmatpush1.bf16.msra.mxu0 %v1538
        %1915 = vmatprep.subr.bf16.mxu0 0
        %1916 = vmatpush1.bf16.msra.mxu0 0
        %1917 = vmatprep.subr.bf16.mxu0 0
        %1918 = vmatpush1.bf16.msra.mxu0 0
        %1919 = vmatprep.subr.bf16.mxu0 0
        %1920 = vmatpush1.bf16.msra.mxu0 0
        %1921 = vmatprep.subr.bf16.mxu0 0
        %1922 = vmatpush1.bf16.msra.mxu0 0
        %1923 = vmatprep.subr.bf16.mxu0 0
        %1924 = vmatpush1.bf16.msra.mxu0 0
        %1925 = vmatprep.subr.bf16.mxu0 0
        %1926 = vmatpush1.bf16.msra.mxu0 0
        %1927 = vmatprep.subr.bf16.mxu0 0
        %1928 = vmatpush1.bf16.msra.mxu0 0
        %1929 = vmatprep.subr.bf16.mxu0 0
        %1930 = vmatpush1.bf16.msra.mxu0 0
        %1931 = vmatprep.subr.bf16.mxu0 0
        %1932 = vmatpush1.bf16.msra.mxu0 0
        %1933 = vmatprep.subr.bf16.mxu0 0
        %1934 = vmatpush1.bf16.msra.mxu0 0
        %1935 = vmatprep.subr.bf16.mxu0 0
        %1936 = vmatpush1.bf16.msra.mxu0 0
        %1937 = vmatprep.subr.bf16.mxu0 0
        %1938 = vmatpush1.bf16.msra.mxu0 0
        %1939 = vmatprep.subr.bf16.mxu0 0
        %1940 = vmatpush1.bf16.msra.mxu0 0
        %1941 = vmatprep.subr.bf16.mxu0 0
        %1942 = vmatpush1.bf16.msra.mxu0 0
        %1943 = vmatprep.subr.bf16.mxu0 0
        %1944 = vmatpush1.bf16.msra.mxu0 0
        %1945 = vmatprep.mubr.bf16.mxu0 0
        %1946 = vmatmul.mubr.bf16.gmra.mrb[0].mxu0 %v1911
        %v1947 = vpop.f32.mrb[0].mxu0
        %v1948 = vadd.f32 0.0, %v1947
        %v1949 = vpop.f32.mrb[0].mxu0
        %v1950 = vpop.f32.mrb[0].mxu0
        %v1951 = vadd.f32 0.0, %v1950
        %v1952 = vpop.f32.mrb[0].mxu0
        %1953 = vdwg.mxu0
        %v1955 = vsel %vm1729, %v1821, 0
        %1957 = vmatprep.subr.bf16.mxu0 0
        %1958 = vmatpush1.bf16.msra.mxu0 %v1539
        %1959 = vmatprep.subr.bf16.mxu0 0
        %1960 = vmatpush1.bf16.msra.mxu0 0
        %1961 = vmatprep.subr.bf16.mxu0 0
        %1962 = vmatpush1.bf16.msra.mxu0 0
        %1963 = vmatprep.subr.bf16.mxu0 0
        %1964 = vmatpush1.bf16.msra.mxu0 0
        %1965 = vmatprep.subr.bf16.mxu0 0
        %1966 = vmatpush1.bf16.msra.mxu0 0
        %1967 = vmatprep.subr.bf16.mxu0 0
        %1968 = vmatpush1.bf16.msra.mxu0 0
        %1969 = vmatprep.subr.bf16.mxu0 0
        %1970 = vmatpush1.bf16.msra.mxu0 0
        %1971 = vmatprep.subr.bf16.mxu0 0
        %1972 = vmatpush1.bf16.msra.mxu0 0
        %1973 = vmatprep.subr.bf16.mxu0 0
        %1974 = vmatpush1.bf16.msra.mxu0 0
        %1975 = vmatprep.subr.bf16.mxu0 0
        %1976 = vmatpush1.bf16.msra.mxu0 0
        %1977 = vmatprep.subr.bf16.mxu0 0
        %1978 = vmatpush1.bf16.msra.mxu0 0
        %1979 = vmatprep.subr.bf16.mxu0 0
        %1980 = vmatpush1.bf16.msra.mxu0 0
        %1981 = vmatprep.subr.bf16.mxu0 0
        %1982 = vmatpush1.bf16.msra.mxu0 0
        %1983 = vmatprep.subr.bf16.mxu0 0
        %1984 = vmatpush1.bf16.msra.mxu0 0
        %1985 = vmatprep.subr.bf16.mxu0 0
        %1986 = vmatpush1.bf16.msra.mxu0 0
        %1987 = vmatprep.subr.bf16.mxu0 0
        %1988 = vmatpush1.bf16.msra.mxu0 0
        %1989 = vmatprep.mubr.bf16.mxu0 0
        %1990 = vmatmul.mubr.bf16.gmra.mrb[0].mxu0 %v1955
        %v1991 = vpop.f32.mrb[0].mxu0
        %v1992 = vadd.f32 0.0, %v1991
        %v1993 = vpop.f32.mrb[0].mxu0
        %v1994 = vpop.f32.mrb[0].mxu0
        %v1995 = vadd.f32 0.0, %v1994
        %v1996 = vpop.f32.mrb[0].mxu0
        %1997 = vdwg.mxu0
        %v1998 = vcombine.low %v1860, %v1948
        %v1999 = vcombine.high %v1860, %v1948
        %v2001 = vunpack.c.l.s4 1983009808
        %v2002 = vunpack.c.0.s8 %v2001
        %v2003 = vlaneseq
        %v2004 = vshrl.u32 %v2003, 7
        %v2005 = vsub.s32 %v2002, %v2004
        %v2006 = vrot.slane %v1998, %v2005
        %v2008 = vunpack.c.l.s4 1983009808
        %v2009 = vunpack.c.0.s8 %v2008
        %v2010 = vlaneseq
        %v2011 = vshrl.u32 %v2010, 7
        %v2012 = vsub.s32 %v2009, %v2011
        %v2013 = vrot.slane %v1999, %v2012
        %v2014 = vcombine.low %v1904, %v1992
        %v2015 = vcombine.high %v1904, %v1992
        %v2017 = vunpack.c.l.s4 1983009808
        %v2018 = vunpack.c.0.s8 %v2017
        %v2019 = vlaneseq
        %v2020 = vshrl.u32 %v2019, 7
        %v2021 = vsub.s32 %v2018, %v2020
        %v2022 = vrot.slane %v2014, %v2021
        %v2024 = vunpack.c.l.s4 1983009808
        %v2025 = vunpack.c.0.s8 %v2024
        %v2026 = vlaneseq
        %v2027 = vshrl.u32 %v2026, 7
        %v2028 = vsub.s32 %v2025, %v2027
        %v2029 = vrot.slane %v2015, %v2028
        %v2030 = vcombine.low %v2006, %v2022
        %v2031 = vcombine.high %v2006, %v2022
        %v2033 = vunpack.c.l.s4 1934713408
        %v2034 = vunpack.c.0.s8 %v2033
        %v2035 = vlaneseq
        %v2036 = vshrl.u32 %v2035, 7
        %v2037 = vsub.s32 %v2034, %v2036
        %v2038 = vrot.slane %v2030, %v2037
        %v2040 = vunpack.c.l.s4 1934713408
        %v2041 = vunpack.c.0.s8 %v2040
        %v2042 = vlaneseq
        %v2043 = vshrl.u32 %v2042, 7
        %v2044 = vsub.s32 %v2041, %v2043
        %v2045 = vrot.slane %v2031, %v2044
        %v2046 = vcombine.low %v2013, %v2029
        %v2047 = vcombine.high %v2013, %v2029
        %v2049 = vunpack.c.l.s4 1934713408
        %v2050 = vunpack.c.0.s8 %v2049
        %v2051 = vlaneseq
        %v2052 = vshrl.u32 %v2051, 7
        %v2053 = vsub.s32 %v2050, %v2052
        %v2054 = vrot.slane %v2046, %v2053
        %v2056 = vunpack.c.l.s4 1934713408
        %v2057 = vunpack.c.0.s8 %v2056
        %v2058 = vlaneseq
        %v2059 = vshrl.u32 %v2058, 7
        %v2060 = vsub.s32 %v2057, %v2059
        %v2061 = vrot.slane %v2047, %v2060
        %v2062 = vcombine.high %v2038, 0.0
        %v2063 = vcombine.high %v2045, 0.0
        %v2064 = vcombine.high %v2054, 0.0
        %v2065 = vcombine.high %v2061, 0.0
        %v2066 = vcombine.low %v1863, %v1951
        %v2067 = vcombine.high %v1863, %v1951
        %v2069 = vunpack.c.l.s4 1983009808
        %v2070 = vunpack.c.0.s8 %v2069
        %v2071 = vlaneseq
        %v2072 = vshrl.u32 %v2071, 7
        %v2073 = vsub.s32 %v2070, %v2072
        %v2074 = vrot.slane %v2066, %v2073
        %v2076 = vunpack.c.l.s4 1983009808
        %v2077 = vunpack.c.0.s8 %v2076
        %v2078 = vlaneseq
        %v2079 = vshrl.u32 %v2078, 7
        %v2080 = vsub.s32 %v2077, %v2079
        %v2081 = vrot.slane %v2067, %v2080
        %v2082 = vcombine.low %v1907, %v1995
        %v2083 = vcombine.high %v1907, %v1995
        %v2085 = vunpack.c.l.s4 1983009808
        %v2086 = vunpack.c.0.s8 %v2085
        %v2087 = vlaneseq
        %v2088 = vshrl.u32 %v2087, 7
        %v2089 = vsub.s32 %v2086, %v2088
        %v2090 = vrot.slane %v2082, %v2089
        %v2092 = vunpack.c.l.s4 1983009808
        %v2093 = vunpack.c.0.s8 %v2092
        %v2094 = vlaneseq
        %v2095 = vshrl.u32 %v2094, 7
        %v2096 = vsub.s32 %v2093, %v2095
        %v2097 = vrot.slane %v2083, %v2096
        %v2098 = vcombine.low %v2074, %v2090
        %v2099 = vcombine.high %v2074, %v2090
        %v2101 = vunpack.c.l.s4 1934713408
        %v2102 = vunpack.c.0.s8 %v2101
        %v2103 = vlaneseq
        %v2104 = vshrl.u32 %v2103, 7
        %v2105 = vsub.s32 %v2102, %v2104
        %v2106 = vrot.slane %v2098, %v2105
        %v2108 = vunpack.c.l.s4 1934713408
        %v2109 = vunpack.c.0.s8 %v2108
        %v2110 = vlaneseq
        %v2111 = vshrl.u32 %v2110, 7
        %v2112 = vsub.s32 %v2109, %v2111
        %v2113 = vrot.slane %v2099, %v2112
        %v2114 = vcombine.low %v2081, %v2097
        %v2115 = vcombine.high %v2081, %v2097
        %v2117 = vunpack.c.l.s4 1934713408
        %v2118 = vunpack.c.0.s8 %v2117
        %v2119 = vlaneseq
        %v2120 = vshrl.u32 %v2119, 7
        %v2121 = vsub.s32 %v2118, %v2120
        %v2122 = vrot.slane %v2114, %v2121
        %v2124 = vunpack.c.l.s4 1934713408
        %v2125 = vunpack.c.0.s8 %v2124
        %v2126 = vlaneseq
        %v2127 = vshrl.u32 %v2126, 7
        %v2128 = vsub.s32 %v2125, %v2127
        %v2129 = vrot.slane %v2115, %v2128
        %v2130 = vcombine.high %v2106, 0.0
        %v2131 = vcombine.high %v2113, 0.0
        %v2132 = vcombine.high %v2122, 0.0
        %v2133 = vcombine.high %v2129, 0.0
        %v2134 = vcombine.low %v2038, %v2045
        %v2136 = vunpack.c.l.s4 1983009808
        %v2137 = vunpack.c.0.s8 %v2136
        %v2138 = vlaneseq
        %v2139 = vshrl.u32 %v2138, 7
        %v2140 = vsub.s32 %v2137, %v2139
        %v2141 = vrot.slane %v2134, %v2140
        %v2142 = vcombine.low %v2062, %v2063
        %v2144 = vunpack.c.l.s4 1983009808
        %v2145 = vunpack.c.0.s8 %v2144
        %v2146 = vlaneseq
        %v2147 = vshrl.u32 %v2146, 7
        %v2148 = vsub.s32 %v2145, %v2147
        %v2149 = vrot.slane %v2142, %v2148
        %v2150 = vcombine.low %v2054, %v2061
        %v2152 = vunpack.c.l.s4 1983009808
        %v2153 = vunpack.c.0.s8 %v2152
        %v2154 = vlaneseq
        %v2155 = vshrl.u32 %v2154, 7
        %v2156 = vsub.s32 %v2153, %v2155
        %v2157 = vrot.slane %v2150, %v2156
        %v2158 = vcombine.low %v2064, %v2065
        %v2160 = vunpack.c.l.s4 1983009808
        %v2161 = vunpack.c.0.s8 %v2160
        %v2162 = vlaneseq
        %v2163 = vshrl.u32 %v2162, 7
        %v2164 = vsub.s32 %v2161, %v2163
        %v2165 = vrot.slane %v2158, %v2164
        %v2166 = vcombine.low %v2141, %v2149
        %v2167 = vcombine.high %v2141, %v2149
        %v2169 = vunpack.c.l.s4 1934713408
        %v2170 = vunpack.c.0.s8 %v2169
        %v2171 = vlaneseq
        %v2172 = vshrl.u32 %v2171, 7
        %v2173 = vsub.s32 %v2170, %v2172
        %v2174 = vrot.slane %v2166, %v2173
        %v2176 = vunpack.c.l.s4 1934713408
        %v2177 = vunpack.c.0.s8 %v2176
        %v2178 = vlaneseq
        %v2179 = vshrl.u32 %v2178, 7
        %v2180 = vsub.s32 %v2177, %v2179
        %v2181 = vrot.slane %v2167, %v2180
        %v2182 = vcombine.low %v2157, %v2165
        %v2183 = vcombine.high %v2157, %v2165
        %v2185 = vunpack.c.l.s4 1934713408
        %v2186 = vunpack.c.0.s8 %v2185
        %v2187 = vlaneseq
        %v2188 = vshrl.u32 %v2187, 7
        %v2189 = vsub.s32 %v2186, %v2188
        %v2190 = vrot.slane %v2182, %v2189
        %v2192 = vunpack.c.l.s4 1934713408
        %v2193 = vunpack.c.0.s8 %v2192
        %v2194 = vlaneseq
        %v2195 = vshrl.u32 %v2194, 7
        %v2196 = vsub.s32 %v2193, %v2195
        %v2197 = vrot.slane %v2183, %v2196
        %v2198 = vcombine.low %v2174, %v2190
        %v2199 = vcombine.high %v2174, %v2190
        %v2200 = vcombine.low %v2181, %v2197
        %v2201 = vcombine.high %v2181, %v2197
        %v2202 = vcombine.low %v2106, %v2113
        %v2204 = vunpack.c.l.s4 1983009808
        %v2205 = vunpack.c.0.s8 %v2204
        %v2206 = vlaneseq
        %v2207 = vshrl.u32 %v2206, 7
        %v2208 = vsub.s32 %v2205, %v2207
        %v2209 = vrot.slane %v2202, %v2208
        %v2210 = vcombine.low %v2130, %v2131
        %v2212 = vunpack.c.l.s4 1983009808
        %v2213 = vunpack.c.0.s8 %v2212
        %v2214 = vlaneseq
        %v2215 = vshrl.u32 %v2214, 7
        %v2216 = vsub.s32 %v2213, %v2215
        %v2217 = vrot.slane %v2210, %v2216
        %v2218 = vcombine.low %v2122, %v2129
        %v2220 = vunpack.c.l.s4 1983009808
        %v2221 = vunpack.c.0.s8 %v2220
        %v2222 = vlaneseq
        %v2223 = vshrl.u32 %v2222, 7
        %v2224 = vsub.s32 %v2221, %v2223
        %v2225 = vrot.slane %v2218, %v2224
        %v2226 = vcombine.low %v2132, %v2133
        %v2228 = vunpack.c.l.s4 1983009808
        %v2229 = vunpack.c.0.s8 %v2228
        %v2230 = vlaneseq
        %v2231 = vshrl.u32 %v2230, 7
        %v2232 = vsub.s32 %v2229, %v2231
        %v2233 = vrot.slane %v2226, %v2232
        %v2234 = vcombine.low %v2209, %v2217
        %v2235 = vcombine.high %v2209, %v2217
        %v2237 = vunpack.c.l.s4 1934713408
        %v2238 = vunpack.c.0.s8 %v2237
        %v2239 = vlaneseq
        %v2240 = vshrl.u32 %v2239, 7
        %v2241 = vsub.s32 %v2238, %v2240
        %v2242 = vrot.slane %v2234, %v2241
        %v2244 = vunpack.c.l.s4 1934713408
        %v2245 = vunpack.c.0.s8 %v2244
        %v2246 = vlaneseq
        %v2247 = vshrl.u32 %v2246, 7
        %v2248 = vsub.s32 %v2245, %v2247
        %v2249 = vrot.slane %v2235, %v2248
        %v2250 = vcombine.low %v2225, %v2233
        %v2251 = vcombine.high %v2225, %v2233
        %v2253 = vunpack.c.l.s4 1934713408
        %v2254 = vunpack.c.0.s8 %v2253
        %v2255 = vlaneseq
        %v2256 = vshrl.u32 %v2255, 7
        %v2257 = vsub.s32 %v2254, %v2256
        %v2258 = vrot.slane %v2250, %v2257
        %v2260 = vunpack.c.l.s4 1934713408
        %v2261 = vunpack.c.0.s8 %v2260
        %v2262 = vlaneseq
        %v2263 = vshrl.u32 %v2262, 7
        %v2264 = vsub.s32 %v2261, %v2263
        %v2265 = vrot.slane %v2251, %v2264
        %v2266 = vcombine.low %v2242, %v2258
        %v2267 = vcombine.high %v2242, %v2258
        %v2268 = vcombine.low %v2249, %v2265
        %v2269 = vcombine.high %v2249, %v2265
        %2272 = vrot.lane.b32.xlu0 %v2199, 8
        %v2273 = vpop.permute.xlu0 %2272
        %2274 = vrot.lane.b32.xlu0 %v2267, 8
        %v2275 = vpop.permute.xlu0 %2274
        %2280 = vrot.lane.b32.xlu0 %v2200, 16
        %v2281 = vpop.permute.xlu0 %2280
        %2282 = vrot.lane.b32.xlu0 %v2268, 16
        %v2283 = vpop.permute.xlu0 %2282
        %2288 = vrot.lane.b32.xlu0 %v2201, 24
        %v2289 = vpop.permute.xlu0 %2288
        %2290 = vrot.lane.b32.xlu0 %v2269, 24
        %v2291 = vpop.permute.xlu0 %2290
        %v2294 = vsel %vm1540, %v2198, %v2273
        %v2295 = vsel %vm1540, %v2266, %v2275
        %v2296 = vsel %vm1729, %v2294, %v2281
        %v2297 = vsel %vm1729, %v2295, %v2283
        %vm2298 = vcmask 195584
        %v2299 = vsel %vm2298, %v2296, %v2289
        %v2300 = vsel %vm2298, %v2297, %v2291
        %v2301 = vpack.c.bf16 %v2300, %v2299
        %v2302 = vld [vmem:[%s350] sm:$0xf]
        %v2303 = vld [vmem:[%s350 + $0x4] sm:$0xf]
        %v2304 = vld [vmem:[%s350 + $0x8] sm:$0xf]
        %v2305 = vld [vmem:[%s350 + $0xc] sm:$0xf]
        %v2306 = vld [vmem:[%s358] sm:$0x1]
        %v2308 = vlaneseq
        %v2309 = vshrl.u32 %v2308, 7
        %v2310 = vsub.s32 0, %v2309
        %v2311 = vrot.slane %v2306, %v2310
        %v2317 = vunpack.c.l.b16 %v2302
        %v2318 = vunpack.c.l.b16 %v2303
        %v2319 = vunpack.c.l.b16 %v2304
        %v2320 = vunpack.c.l.b16 %v2305
        %v2321 = vpack.c.b16 %v2318, %v2317
        %v2322 = vpack.c.b16 %v2320, %v2319
        %v2326 = vsel %vm475, %v2301, 0
        %2328 = vmatprep.subr.bf16.mxu0 0
        %2329 = vmatpush1.bf16.msra.mxu0 %v2321
        %2330 = vmatprep.subr.bf16.mxu0 0
        %2331 = vmatpush1.bf16.msra.mxu0 %v2322
        %2332 = vmatprep.subr.bf16.mxu0 0
        %2333 = vmatpush1.bf16.msra.mxu0 0
        %2334 = vmatprep.subr.bf16.mxu0 0
        %2335 = vmatpush1.bf16.msra.mxu0 0
        %2336 = vmatprep.subr.bf16.mxu0 0
        %2337 = vmatpush1.bf16.msra.mxu0 0
        %2338 = vmatprep.subr.bf16.mxu0 0
        %2339 = vmatpush1.bf16.msra.mxu0 0
        %2340 = vmatprep.subr.bf16.mxu0 0
        %2341 = vmatpush1.bf16.msra.mxu0 0
        %2342 = vmatprep.subr.bf16.mxu0 0
        %2343 = vmatpush1.bf16.msra.mxu0 0
        %2344 = vmatprep.subr.bf16.mxu0 0
        %2345 = vmatpush1.bf16.msra.mxu0 0
        %2346 = vmatprep.subr.bf16.mxu0 0
        %2347 = vmatpush1.bf16.msra.mxu0 0
        %2348 = vmatprep.subr.bf16.mxu0 0
        %2349 = vmatpush1.bf16.msra.mxu0 0
        %2350 = vmatprep.subr.bf16.mxu0 0
        %2351 = vmatpush1.bf16.msra.mxu0 0
        %2352 = vmatprep.subr.bf16.mxu0 0
        %2353 = vmatpush1.bf16.msra.mxu0 0
        %2354 = vmatprep.subr.bf16.mxu0 0
        %2355 = vmatpush1.bf16.msra.mxu0 0
        %2356 = vmatprep.subr.bf16.mxu0 0
        %2357 = vmatpush1.bf16.msra.mxu0 0
        %2358 = vmatprep.subr.bf16.mxu0 0
        %2359 = vmatpush1.bf16.msra.mxu0 0
        %2360 = vmatprep.mubr.bf16.mxu0 0
        %2361 = vmatmul.mubr.bf16.gmra.mrb[0].mxu0 %v2326
        %v2362 = vpop.f32.mrb[0].mxu0
        %v2363 = vadd.f32 %v2311, %v2362
        %v2364 = vpop.f32.mrb[0].mxu0
        %v2365 = vpop.f32.mrb[0].mxu0
        %v2366 = vadd.f32 %v2311, %v2365
        %v2367 = vpop.f32.mrb[0].mxu0
        %2368 = vdwg.mxu0
        %v2369 = vadd.f32 %v2363, %v418
        %v2370 = vadd.f32 %v2366, %v419
        %2371 = vst.msk [vmem:[#allocation2] sm:$0xff] %vm475, %v2369
        %2372 = vst.msk [vmem:[#allocation2 + $0x8] sm:$0xff] %vm475, %v2370
        %p2373 = scmp.eq.s32.totalorder %s34, 1
        // Predicated region
        $region65: #{tpu_custom_call.1} parent=43 // pred_check
          %p2374 = pneg %p2373
        $region66: #{tpu_custom_call.1} parent=43 // pred_check_branch
          %2376 = sbr.rel (%p2374) target = $region68
        $region67: #{tpu_custom_call.1} parent=43 // pred_region
          %v2377 = vpack.c.bf16 %v2370, %v2369
          %v2378 = vld [vmem:[%s5] sm:$0xf]
          %v2379 = vld [vmem:[%s5 + $0x4] sm:$0xf]
          %v2380 = vld [vmem:[%s5 + $0x8] sm:$0xf]
          %v2381 = vld [vmem:[%s5 + $0xc] sm:$0xf]
          %v2386 = vunpack.c.l.b16 %v2378
          %v2387 = vunpack.c.l.b16 %v2379
          %v2388 = vunpack.c.l.b16 %v2380
          %v2389 = vunpack.c.l.b16 %v2381
          %v2390 = vpack.c.b16 %v2387, %v2386
          %v2391 = vpack.c.b16 %v2389, %v2388
          %v2395 = vsel %vm475, %v2377, 0
          %2397 = vmatprep.subr.bf16.mxu0 0
          %2398 = vmatpush1.bf16.msra.mxu0 %v2390
          %2399 = vmatprep.subr.bf16.mxu0 0
          %2400 = vmatpush1.bf16.msra.mxu0 %v2391
          %2401 = vmatprep.subr.bf16.mxu0 0
          %2402 = vmatpush1.bf16.msra.mxu0 0
          %2403 = vmatprep.subr.bf16.mxu0 0
          %2404 = vmatpush1.bf16.msra.mxu0 0
          %2405 = vmatprep.subr.bf16.mxu0 0
          %2406 = vmatpush1.bf16.msra.mxu0 0
          %2407 = vmatprep.subr.bf16.mxu0 0
          %2408 = vmatpush1.bf16.msra.mxu0 0
          %2409 = vmatprep.subr.bf16.mxu0 0
          %2410 = vmatpush1.bf16.msra.mxu0 0
          %2411 = vmatprep.subr.bf16.mxu0 0
          %2412 = vmatpush1.bf16.msra.mxu0 0
          %2413 = vmatprep.subr.bf16.mxu0 0
          %2414 = vmatpush1.bf16.msra.mxu0 0
          %2415 = vmatprep.subr.bf16.mxu0 0
          %2416 = vmatpush1.bf16.msra.mxu0 0
          %2417 = vmatprep.subr.bf16.mxu0 0
          %2418 = vmatpush1.bf16.msra.mxu0 0
          %2419 = vmatprep.subr.bf16.mxu0 0
          %2420 = vmatpush1.bf16.msra.mxu0 0
          %2421 = vmatprep.subr.bf16.mxu0 0
          %2422 = vmatpush1.bf16.msra.mxu0 0
          %2423 = vmatprep.subr.bf16.mxu0 0
          %2424 = vmatpush1.bf16.msra.mxu0 0
          %2425 = vmatprep.subr.bf16.mxu0 0
          %2426 = vmatpush1.bf16.msra.mxu0 0
          %2427 = vmatprep.subr.bf16.mxu0 0
          %2428 = vmatpush1.bf16.msra.mxu0 0
          %2429 = vmatprep.mubr.bf16.mxu0 0
          %2430 = vmatmul.mubr.bf16.gmra.mrb[0].mxu0 %v2395
          %v2431 = vpop.f32.mrb[0].mxu0
          %v2432 = vadd.f32 0.0, %v2431
          %v2433 = vpop.f32.mrb[0].mxu0
          %v2434 = vpop.f32.mrb[0].mxu0
          %v2435 = vadd.f32 0.0, %v2434
          %v2436 = vpop.f32.mrb[0].mxu0
          %2437 = vdwg.mxu0
          %2438 = vst [vmem:[%s403] sm:$0xff] %v2432
          %2439 = vst [vmem:[%s403 + $0x8] sm:$0xff] %v2435
        $region68: #{tpu_custom_call.1} parent=43 // pred_fallthru
          _
        %s2440 = sand.u32 %s200, 1
        %s2441 = scalar_lea.sflag [#allocation5], %s2440
        %s2442 = sand.u32 %s200, 1
        %s2443 = smul.addr %s2442, 16
        %s2444 = scalar_lea.vmem [#allocation11], %s2443
        // Predicated region
        $region69: #{tpu_custom_call.1} parent=43 // pred_check
          %p2445 = pneg %p210
        $region70: #{tpu_custom_call.1} parent=43 // pred_check_branch
          %2447 = sbr.rel (%p2445) target = $region72
        $region71: #{tpu_custom_call.1} parent=43 // pred_region
          %s2448 = smul.u32 2, %s33
          %s2450 = ssub.s32 256, 256
          %2451 = vsyncadd %s2441, %s2450
          %s2452 = smul.addr %s2448, 128
          %s2453 = scalar_lea.hbm %s6, %s2452
          %s2454 = sshll.u32 %s2444, 4
          %s2455 = int_to_ptr.vmem [resolvable:$true] %s2454
          %2460 = dma.vmem_to_hbm [thread:$0]  %s2455, 256, %s2453, %s2441, 128, 128, 8
        $region72: #{tpu_custom_call.1} parent=43 // pred_fallthru
          _
      $region44: #{tpu_custom_call.1} parent=5 // pred_fallthru
        _
      %p2461 = scmp.le.s32.totalorder 2, %s24
      // Predicated region
      $region73: #{tpu_custom_call.1} parent=5 // pred_check
        %p2462 = pneg %p2461
      $region74: #{tpu_custom_call.1} parent=5 // pred_check_branch
        %2464 = sbr.rel (%p2462) target = $region76
      $region75: #{tpu_custom_call.1} parent=5 // pred_region
        %s2465 = ssub.s32 %s24, 2
        // Predicated region
        $region77: #{tpu_custom_call.1} parent=75 // pred_check
          %p2466 = pneg %p216
        $region78: #{tpu_custom_call.1} parent=75 // pred_check_branch
          %2468 = sbr.rel (%p2466) target = $region80
        $region79: #{tpu_custom_call.1} parent=75 // pred_region
          %s2469 = sand.u32 %s201, 1
          %s2470 = scalar_lea.sflag [#allocation5], %s2469
          %s2471 = sand.u32 %s201, 1
          %s2472 = smul.addr %s2471, 16
          %s2473 = scalar_lea.vmem [#allocation11], %s2472
          %2474 = dma.done %s2470, 256
        $region80: #{tpu_custom_call.1} parent=75 // pred_fallthru
          _
      $region76: #{tpu_custom_call.1} parent=5 // pred_fallthru
        _
    $region6: #{tpu_custom_call.1} parent=1 // loop_footer
      %s28 = sadd.s32 1, %s24
    $region7: #{tpu_custom_call.1} parent=1 // loop_footer_branch
      %23 = sbr.rel target = $region3
    $region8: #{tpu_custom_call.1} parent=1 // loop_exit
      _
    %2475 = vsyncpa [#allocation4], 1
    %s2476 = scalar_lea.sflag [#allocation4], 1
    %2477 = vsyncpa %s2476, 1
    %2478 = vsyncpa [#allocation7], 1
    %s2479 = scalar_lea.sflag [#allocation7], 1
    %2480 = vsyncpa %s2479, 1
    %2481 = vsyncpa [#allocation10], 1
    %s2482 = scalar_lea.sflag [#allocation10], 1
    %2483 = vsyncpa %s2482, 1
    %2484 = vsyncpa [#allocation5], 1
    %s2485 = scalar_lea.sflag [#allocation5], 1
    %2486 = vsyncpa %s2485, 1

</llo_original>
